<compile_context>
chip_gen: v6e
topology: v6e:2x2x1
jax: 0.10.0
libtpu: 0.0.40
codegen_flags: <defaults>
</compile_context>

<pallas_src>
import jax
import jax.numpy as jnp
from jax.experimental import pallas as pl
from jax.experimental.pallas import tpu as pltpu

IN_DIM = 64
H1, H2, H3 = 128, 256, 512
OUT_DIM = 784
OUT_PAD = 896          # 7 * 128 -> lane-dense output stores
TB_MAX = 512           # max batch tile (sweet spot for mem-bound tiles)


def decoder_kernel(x_ref,
                   w1_ref, b1_ref,
                   w2_ref, b2_ref,
                   w3_ref, b3_ref,
                   w4_ref, b4_ref,
                   o_ref):
    # Layer 1: (TB,64) @ (64,128) + (1,128) -> ReLU
    h = jnp.dot(x_ref[...].astype(jnp.bfloat16), w1_ref[...],
                preferred_element_type=jnp.float32)
    h = jnp.maximum(h + b1_ref[...], 0.0)

    # Layer 2: (TB,128) @ (128,256) + (1,256) -> ReLU
    h = jnp.dot(h.astype(jnp.bfloat16), w2_ref[...],
                preferred_element_type=jnp.float32)
    h = jnp.maximum(h + b2_ref[...], 0.0)

    # Layer 3: (TB,256) @ (256,512) + (1,512) -> ReLU
    h = jnp.dot(h.astype(jnp.bfloat16), w3_ref[...],
                preferred_element_type=jnp.float32)
    h = jnp.maximum(h + b3_ref[...], 0.0)

    # Layer 4: (TB,512) @ (512,896) + (1,896) -> Sigmoid
    z = jnp.dot(h.astype(jnp.bfloat16), w4_ref[...],
                preferred_element_type=jnp.float32)
    z = z + b4_ref[...]
    # sigmoid(z) == 0.5*tanh(0.5*z) + 0.5 : single EUP transcendental/element
    o_ref[...] = 0.5 * jnp.tanh(0.5 * z) + 0.5


def _round_up(n, m):
    return ((n + m - 1) // m) * m


@jax.jit
def decoder_forward(x, params):
    """x: (B, 64) float32. params: bf16 weights (in,out) [w4/b4 lane-padded to
    896], f32 biases (1,out). Returns (B, 784) float32."""
    B = x.shape[0]
    # Adaptive batch tile: multiple of 8 (sublane), capped at TB_MAX.
    tb = min(TB_MAX, _round_up(max(B, 1), 8))
    n_tiles = pl.cdiv(B, tb)
    B_pad = n_tiles * tb
    if B_pad != B:
        x = jnp.pad(x, ((0, B_pad - B), (0, 0)))

    batch = lambda i: (i, 0)   # x / out tiles march over the batch
    const = lambda i: (0, 0)   # weights & biases: resident in VMEM, DMA'd once

    out = pl.pallas_call(
        decoder_kernel,
        out_shape=jax.ShapeDtypeStruct((B_pad, OUT_PAD), jnp.float32),
        grid=(n_tiles,),
        in_specs=[
            pl.BlockSpec((tb, IN_DIM), batch),
            pl.BlockSpec((IN_DIM, H1), const), pl.BlockSpec((1, H1), const),
            pl.BlockSpec((H1, H2), const),     pl.BlockSpec((1, H2), const),
            pl.BlockSpec((H2, H3), const),     pl.BlockSpec((1, H3), const),
            pl.BlockSpec((H3, OUT_PAD), const), pl.BlockSpec((1, OUT_PAD), const),
        ],
        out_specs=pl.BlockSpec((tb, OUT_PAD), batch),
        compiler_params=pltpu.CompilerParams(
            dimension_semantics=("parallel",),
            vmem_limit_bytes=32 * 1024 * 1024,   # fits v5e/v6e/v7x budgets
        ),
    )(x,
      params["w1"], params["b1"],
      params["w2"], params["b2"],
      params["w3"], params["b3"],
      params["w4"], params["b4"])

    return out[:B, :OUT_DIM]


def init_params(key):
    """Deterministic f32 master params. Weights (in,out), biases (1,out)."""
    dims = [(IN_DIM, H1), (H1, H2), (H2, H3), (H3, OUT_DIM)]
    params = {}
    keys = jax.random.split(key, 2 * len(dims))
    for i, (fan_in, fan_out) in enumerate(dims):
        bound = 1.0 / (fan_in ** 0.5)   # PyTorch-style uniform init
        params[f"w{i + 1}"] = jax.random.uniform(
            keys[2 * i], (fan_in, fan_out), minval=-bound, maxval=bound,
            dtype=jnp.float32)
        params[f"b{i + 1}"] = jax.random.uniform(
            keys[2 * i + 1], (1, fan_out), minval=-bound, maxval=bound,
            dtype=jnp.float32)
    return params


def prepare_params(params):
    """Cast weights to bf16 and pad layer-4 to the lane-dense 896 output width."""
    prepared = {}
    for i in range(1, 5):
        w, b = params[f"w{i}"], params[f"b{i}"]
        if i == 4:
            w = jnp.pad(w, ((0, 0), (0, OUT_PAD - OUT_DIM)))
            b = jnp.pad(b, ((0, 0), (0, OUT_PAD - OUT_DIM)))
        prepared[f"w{i}"] = w.astype(jnp.bfloat16)
        prepared[f"b{i}"] = b.astype(jnp.float32)
    return prepared


def reference_forward_f32(x, params):
    """Full-f32 reference (matches the original PyTorch semantics)."""
    h = jnp.maximum(x @ params["w1"] + params["b1"], 0.0)
    h = jnp.maximum(h @ params["w2"] + params["b2"], 0.0)
    h = jnp.maximum(h @ params["w3"] + params["b3"], 0.0)
    return jax.nn.sigmoid(h @ params["w4"] + params["b4"])


def reference_forward_mixed(x, params):
    """Pure-JAX reference mimicking the kernel's precision: bf16 matmul inputs,
    f32 accumulation and f32 elementwise."""
    def mm(a, w):
        return jnp.dot(a.astype(jnp.bfloat16).astype(jnp.float32),
                       w.astype(jnp.bfloat16).astype(jnp.float32),
                       precision=jax.lax.Precision.HIGHEST)
    h = jnp.maximum(mm(x, params["w1"]) + params["b1"], 0.0)
    h = jnp.maximum(mm(h, params["w2"]) + params["b2"], 0.0)
    h = jnp.maximum(mm(h, params["w3"]) + params["b3"], 0.0)
    return jax.nn.sigmoid(mm(h, params["w4"]) + params["b4"])


if __name__ == "__main__":
    key = jax.random.PRNGKey(0)
    k_params, k_x1, k_x2 = jax.random.split(key, 3)

    params_f32 = init_params(k_params)
    params_kernel = prepare_params(params_f32)

    # Case 1: small decode-style batch (B=8 -> single 8-row tile, no waste).
    B1 = 8
    x1 = jax.random.normal(k_x1, (B1, IN_DIM), dtype=jnp.float32)
    out1 = jax.block_until_ready(decoder_forward(x1, params_kernel))
    assert out1.shape == (B1, OUT_DIM), out1.shape
    assert jnp.allclose(out1, reference_forward_mixed(x1, params_f32),
                        atol=2e-3, rtol=2e-3), "B=8 mismatch vs mixed reference"
    assert jnp.allclose(out1, reference_forward_f32(x1, params_f32),
                        atol=3e-2, rtol=3e-2), "B=8 mismatch vs f32 reference"

    # Case 2: multi-tile batch with padding (B=600 -> two 512-row tiles).
    B2 = 600
    x2 = jax.random.normal(k_x2, (B2, IN_DIM), dtype=jnp.float32)
    out2 = jax.block_until_ready(decoder_forward(x2, params_kernel))
    assert out2.shape == (B2, OUT_DIM), out2.shape
    assert jnp.allclose(out2, reference_forward_mixed(x2, params_f32),
                        atol=2e-3, rtol=2e-3), "B=600 mismatch vs mixed reference"
    assert jnp.allclose(out2, reference_forward_f32(x2, params_f32),
                        atol=3e-2, rtol=3e-2), "B=600 mismatch vs f32 reference"

    print("KERNEL_OK")
</pallas_src>

<mosaic_0001>
module attributes {stable_mosaic.version = 11 : i64} {
  func.func @decoder_kernel(%arg0: i32, %arg1: memref<8x64xf32, #tpu.memory_space<vmem>>, %arg2: memref<64x128xbf16, #tpu.memory_space<vmem>>, %arg3: memref<1x128xf32, #tpu.memory_space<vmem>>, %arg4: memref<128x256xbf16, #tpu.memory_space<vmem>>, %arg5: memref<1x256xf32, #tpu.memory_space<vmem>>, %arg6: memref<256x512xbf16, #tpu.memory_space<vmem>>, %arg7: memref<1x512xf32, #tpu.memory_space<vmem>>, %arg8: memref<512x896xbf16, #tpu.memory_space<vmem>>, %arg9: memref<1x896xf32, #tpu.memory_space<vmem>>, %arg10: memref<8x896xf32, #tpu.memory_space<vmem>>) attributes {dimension_semantics = [#tpu.dimension_semantics<parallel>], iteration_bounds = array<i64: 1>, scalar_prefetch = 0 : i64, scratch_operands = 0 : i64, tpu.core_type = #tpu.core_type<tc>, window_params = [{transform_indices = @transform_0, window_bounds = array<i64: 8, 64>}, {pipeline_mode = #tpu.pipeline_mode<synchronous>, transform_indices = @transform_1, window_bounds = array<i64: 64, 128>}, {pipeline_mode = #tpu.pipeline_mode<synchronous>, transform_indices = @transform_2, window_bounds = array<i64: 1, 128>}, {pipeline_mode = #tpu.pipeline_mode<synchronous>, transform_indices = @transform_3, window_bounds = array<i64: 128, 256>}, {pipeline_mode = #tpu.pipeline_mode<synchronous>, transform_indices = @transform_4, window_bounds = array<i64: 1, 256>}, {pipeline_mode = #tpu.pipeline_mode<synchronous>, transform_indices = @transform_5, window_bounds = array<i64: 256, 512>}, {pipeline_mode = #tpu.pipeline_mode<synchronous>, transform_indices = @transform_6, window_bounds = array<i64: 1, 512>}, {pipeline_mode = #tpu.pipeline_mode<synchronous>, transform_indices = @transform_7, window_bounds = array<i64: 512, 896>}, {pipeline_mode = #tpu.pipeline_mode<synchronous>, transform_indices = @transform_8, window_bounds = array<i64: 1, 896>}, {transform_indices = @transform_9, window_bounds = array<i64: 8, 896>}]} {
    %c0 = arith.constant 0 : index
    %c0_0 = arith.constant 0 : index
    %0 = vector.load %arg1[%c0, %c0_0] : memref<8x64xf32, #tpu.memory_space<vmem>>, vector<8x64xf32>
    %1 = arith.truncf %0 : vector<8x64xf32> to vector<8x64xbf16>
    %c0_1 = arith.constant 0 : index
    %c0_2 = arith.constant 0 : index
    %2 = vector.load %arg2[%c0_1, %c0_2] : memref<64x128xbf16, #tpu.memory_space<vmem>>, vector<64x128xbf16>
    %cst = arith.constant dense<0.000000e+00> : vector<8x128xf32>
    %3 = tpu.matmul %1, %2, %cst {dimension_numbers = #tpu.dot_dimension_numbers<[1], [0], [0], [1], [0, 0, 1, 1], [], []>} : vector<8x64xbf16>, vector<64x128xbf16>, vector<8x128xf32> -> vector<8x128xf32>
    %c0_3 = arith.constant 0 : index
    %c0_4 = arith.constant 0 : index
    %4 = vector.load %arg3[%c0_3, %c0_4] : memref<1x128xf32, #tpu.memory_space<vmem>>, vector<1x128xf32>
    %5 = vector.broadcast %4 : vector<1x128xf32> to vector<8x128xf32>
    %6 = arith.addf %3, %5 : vector<8x128xf32>
    %cst_5 = arith.constant 0.000000e+00 : f32
    %7 = vector.broadcast %cst_5 : f32 to vector<8x128xf32>
    %8 = arith.maximumf %6, %7 : vector<8x128xf32>
    %9 = arith.truncf %8 : vector<8x128xf32> to vector<8x128xbf16>
    %c0_6 = arith.constant 0 : index
    %c0_7 = arith.constant 0 : index
    %10 = vector.load %arg4[%c0_6, %c0_7] : memref<128x256xbf16, #tpu.memory_space<vmem>>, vector<128x256xbf16>
    %cst_8 = arith.constant dense<0.000000e+00> : vector<8x256xf32>
    %11 = tpu.matmul %9, %10, %cst_8 {dimension_numbers = #tpu.dot_dimension_numbers<[1], [0], [0], [1], [0, 0, 1, 1], [], []>} : vector<8x128xbf16>, vector<128x256xbf16>, vector<8x256xf32> -> vector<8x256xf32>
    %c0_9 = arith.constant 0 : index
    %c0_10 = arith.constant 0 : index
    %12 = vector.load %arg5[%c0_9, %c0_10] : memref<1x256xf32, #tpu.memory_space<vmem>>, vector<1x256xf32>
    %13 = vector.broadcast %12 : vector<1x256xf32> to vector<8x256xf32>
    %14 = arith.addf %11, %13 : vector<8x256xf32>
    %cst_11 = arith.constant 0.000000e+00 : f32
    %15 = vector.broadcast %cst_11 : f32 to vector<8x256xf32>
    %16 = arith.maximumf %14, %15 : vector<8x256xf32>
    %17 = arith.truncf %16 : vector<8x256xf32> to vector<8x256xbf16>
    %c0_12 = arith.constant 0 : index
    %c0_13 = arith.constant 0 : index
    %18 = vector.load %arg6[%c0_12, %c0_13] : memref<256x512xbf16, #tpu.memory_space<vmem>>, vector<256x512xbf16>
    %cst_14 = arith.constant dense<0.000000e+00> : vector<8x512xf32>
    %19 = tpu.matmul %17, %18, %cst_14 {dimension_numbers = #tpu.dot_dimension_numbers<[1], [0], [0], [1], [0, 0, 1, 1], [], []>} : vector<8x256xbf16>, vector<256x512xbf16>, vector<8x512xf32> -> vector<8x512xf32>
    %c0_15 = arith.constant 0 : index
    %c0_16 = arith.constant 0 : index
    %20 = vector.load %arg7[%c0_15, %c0_16] : memref<1x512xf32, #tpu.memory_space<vmem>>, vector<1x512xf32>
    %21 = vector.broadcast %20 : vector<1x512xf32> to vector<8x512xf32>
    %22 = arith.addf %19, %21 : vector<8x512xf32>
    %cst_17 = arith.constant 0.000000e+00 : f32
    %23 = vector.broadcast %cst_17 : f32 to vector<8x512xf32>
    %24 = arith.maximumf %22, %23 : vector<8x512xf32>
    %25 = arith.truncf %24 : vector<8x512xf32> to vector<8x512xbf16>
    %c0_18 = arith.constant 0 : index
    %c0_19 = arith.constant 0 : index
    %26 = vector.load %arg8[%c0_18, %c0_19] : memref<512x896xbf16, #tpu.memory_space<vmem>>, vector<512x896xbf16>
    %cst_20 = arith.constant dense<0.000000e+00> : vector<8x896xf32>
    %27 = tpu.matmul %25, %26, %cst_20 {dimension_numbers = #tpu.dot_dimension_numbers<[1], [0], [0], [1], [0, 0, 1, 1], [], []>} : vector<8x512xbf16>, vector<512x896xbf16>, vector<8x896xf32> -> vector<8x896xf32>
    %c0_21 = arith.constant 0 : index
    %c0_22 = arith.constant 0 : index
    %28 = vector.load %arg9[%c0_21, %c0_22] : memref<1x896xf32, #tpu.memory_space<vmem>>, vector<1x896xf32>
    %29 = vector.broadcast %28 : vector<1x896xf32> to vector<8x896xf32>
    %30 = arith.addf %27, %29 : vector<8x896xf32>
    %cst_23 = arith.constant 5.000000e-01 : f32
    %31 = vector.broadcast %cst_23 : f32 to vector<8x896xf32>
    %32 = arith.mulf %31, %30 : vector<8x896xf32>
    %33 = math.tanh %32 : vector<8x896xf32>
    %cst_24 = arith.constant 5.000000e-01 : f32
    %34 = vector.broadcast %cst_24 : f32 to vector<8x896xf32>
    %35 = arith.mulf %34, %33 : vector<8x896xf32>
    %cst_25 = arith.constant 5.000000e-01 : f32
    %36 = vector.broadcast %cst_25 : f32 to vector<8x896xf32>
    %37 = arith.addf %35, %36 : vector<8x896xf32>
    %c0_26 = arith.constant 0 : index
    %c0_27 = arith.constant 0 : index
    %38 = vector.load %arg10[%c0_26, %c0_27] : memref<8x896xf32, #tpu.memory_space<vmem>>, vector<8x896xf32>
    tpu.vector_store %arg10[%c0_26, %c0_27], %37 {strides = array<i32>} : memref<8x896xf32, #tpu.memory_space<vmem>>, vector<8x896xf32>,
    return
  }
  func.func @transform_0(%arg0: i32) -> (i32, i32) {
    %c0_i32 = arith.constant 0 : i32
    %c0_i32_0 = arith.constant 0 : i32
    return %arg0, %c0_i32 : i32, i32
  }
  func.func @transform_1(%arg0: i32) -> (i32, i32) {
    %c0_i32 = arith.constant 0 : i32
    %c0_i32_0 = arith.constant 0 : i32
    %c0_i32_1 = arith.constant 0 : i32
    return %c0_i32, %c0_i32_0 : i32, i32
  }
  func.func @transform_2(%arg0: i32) -> (i32, i32) {
    %c0_i32 = arith.constant 0 : i32
    %c0_i32_0 = arith.constant 0 : i32
    %c0_i32_1 = arith.constant 0 : i32
    return %c0_i32, %c0_i32_0 : i32, i32
  }
  func.func @transform_3(%arg0: i32) -> (i32, i32) {
    %c0_i32 = arith.constant 0 : i32
    %c0_i32_0 = arith.constant 0 : i32
    %c0_i32_1 = arith.constant 0 : i32
    return %c0_i32, %c0_i32_0 : i32, i32
  }
  func.func @transform_4(%arg0: i32) -> (i32, i32) {
    %c0_i32 = arith.constant 0 : i32
    %c0_i32_0 = arith.constant 0 : i32
    %c0_i32_1 = arith.constant 0 : i32
    return %c0_i32, %c0_i32_0 : i32, i32
  }
  func.func @transform_5(%arg0: i32) -> (i32, i32) {
    %c0_i32 = arith.constant 0 : i32
    %c0_i32_0 = arith.constant 0 : i32
    %c0_i32_1 = arith.constant 0 : i32
    return %c0_i32, %c0_i32_0 : i32, i32
  }
  func.func @transform_6(%arg0: i32) -> (i32, i32) {
    %c0_i32 = arith.constant 0 : i32
    %c0_i32_0 = arith.constant 0 : i32
    %c0_i32_1 = arith.constant 0 : i32
    return %c0_i32, %c0_i32_0 : i32, i32
  }
  func.func @transform_7(%arg0: i32) -> (i32, i32) {
    %c0_i32 = arith.constant 0 : i32
    %c0_i32_0 = arith.constant 0 : i32
    %c0_i32_1 = arith.constant 0 : i32
    return %c0_i32, %c0_i32_0 : i32, i32
  }
  func.func @transform_8(%arg0: i32) -> (i32, i32) {
    %c0_i32 = arith.constant 0 : i32
    %c0_i32_0 = arith.constant 0 : i32
    %c0_i32_1 = arith.constant 0 : i32
    return %c0_i32, %c0_i32_0 : i32, i32
  }
  func.func @transform_9(%arg0: i32) -> (i32, i32) {
    %c0_i32 = arith.constant 0 : i32
    %c0_i32_0 = arith.constant 0 : i32
    return %arg0, %c0_i32 : i32, i32
  }
}

</mosaic_0001>

<llo_original>
// kernel: decoder_forward.1
$region0: #{decoder_forward.1}
  #allocation0 [shape = 'u32[]', space=smem, size = 0x4, offset = 0x4, fixed_abs, tag = 'smem constant byte address 0x4 - core index']
  #allocation1 [shape = 'u32[144,128]{1,0:T(1,128)}', space=vmem, size = 0x12000, scoped, tag = 'internal scratch']
  %s0 = inlined_call_operand.hbm [shape: f32[8,64], index: 0, kind: input, shape index: {}]
  %s1 = inlined_call_operand.hbm [shape: bf16[64,128], index: 1, kind: input, shape index: {}]
  %s2 = inlined_call_operand.hbm [shape: f32[1,128], index: 2, kind: input, shape index: {}]
  %s3 = inlined_call_operand.hbm [shape: bf16[128,256], index: 3, kind: input, shape index: {}]
  %s4 = inlined_call_operand.hbm [shape: f32[1,256], index: 4, kind: input, shape index: {}]
  %s5 = inlined_call_operand.hbm [shape: bf16[256,512], index: 5, kind: input, shape index: {}]
  %s6 = inlined_call_operand.hbm [shape: f32[1,512], index: 6, kind: input, shape index: {}]
  %s7 = inlined_call_operand.hbm [shape: bf16[512,896], index: 7, kind: input, shape index: {}]
  %s8 = inlined_call_operand.vmem [shape: f32[1,896], index: 8, kind: input, shape index: {}]
  %s9 = inlined_call_operand.hbm [shape: f32[8,896], index: 9, kind: output, shape index: {}]
  %s10 = sld [smem:[#allocation0]]
  $region78: #{decoder_forward.1} parent=0
    _
  %s12 = ssub.s32 1, %s10
  %s13 = scalar_select 0, %s12, %s10
  $region1: #{decoder_forward.1} parent=0
    #allocation2 [shape = 'u8[4096]{0}', space=vmem, size = 0x1000, scoped, tag = 'input window, operand 0, single buffered']
    #allocation3 [shape = 's32[1]{0}', space=sflag, size = 0x4, scoped, tag = 'scoped memory for decoder_forward.1']
    #allocation4 [shape = 's32[1]{0}', space=sflag, size = 0x4, scoped, tag = 'scoped memory for decoder_forward.1']
    #allocation5 [shape = 'u8[16384]{0}', space=vmem, size = 0x4000, scoped, tag = 'input window, operand 1, single buffered']
    #allocation6 [shape = 's32[1]{0}', space=sflag, size = 0x4, scoped, tag = 'scoped memory for decoder_forward.1']
    #allocation7 [shape = 'u8[512]{0}', space=vmem, size = 0x400, scoped, tag = 'input window, operand 2, single buffered']
    #allocation8 [shape = 'u8[65536]{0}', space=vmem, size = 0x10000, scoped, tag = 'input window, operand 3, single buffered']
    #allocation9 [shape = 's32[1]{0}', space=sflag, size = 0x4, scoped, tag = 'scoped memory for decoder_forward.1']
    #allocation10 [shape = 'u8[1024]{0}', space=vmem, size = 0x400, scoped, tag = 'input window, operand 4, single buffered']
    #allocation11 [shape = 'u8[262144]{0}', space=vmem, size = 0x40000, scoped, tag = 'input window, operand 5, single buffered']
    #allocation12 [shape = 's32[1]{0}', space=sflag, size = 0x4, scoped, tag = 'scoped memory for decoder_forward.1']
    #allocation13 [shape = 'u8[2048]{0}', space=vmem, size = 0x800, scoped, tag = 'input window, operand 6, single buffered']
    #allocation14 [shape = 'u8[917504]{0}', space=vmem, size = 0xe0000, scoped, tag = 'input window, operand 7, single buffered']
    #allocation15 [shape = 's32[1]{0}', space=sflag, size = 0x4, scoped, tag = 'scoped memory for decoder_forward.1']
    #allocation16 [shape = 'u8[28672]{0}', space=vmem, size = 0x7000, scoped, tag = 'output window, operand 0, single buffered']
    %14 = vsyncpa [#allocation3], 0
    %15 = vsyncpa [#allocation6], 0
    %16 = vsyncpa [#allocation9], 0
    %17 = vsyncpa [#allocation12], 0
    %18 = vsyncpa [#allocation15], 0
    %19 = vsyncpa [#allocation4], 0
    // Predicated region
    $region2: #{decoder_forward.1} parent=1 // pred_check
      _
    $region3: #{decoder_forward.1} parent=1 // pred_check_branch
      %21 = sbr.rel (0) target = $region5
    $region4: #{decoder_forward.1} parent=1 // pred_region
      %s23 = ssub.s32 128, 128
      %24 = vsyncadd [#allocation3], %s23
      %s26 = sshll.u32 [#allocation2], 4
      %s27 = int_to_ptr.vmem [resolvable:$true] %s26
      %29 = dma.hbm_to_vmem [thread:$0]  %s0, 128, %s27, [#allocation3]
    $region5: #{decoder_forward.1} parent=1 // pred_fallthru
      _
    // Predicated region
    $region6: #{decoder_forward.1} parent=1 // pred_check
      _
    $region7: #{decoder_forward.1} parent=1 // pred_check_branch
      %31 = sbr.rel (0) target = $region9
    $region8: #{decoder_forward.1} parent=1 // pred_region
      %s33 = ssub.s32 512, 512
      %34 = vsyncadd [#allocation6], %s33
      %s35 = sshll.u32 [#allocation5], 4
      %s36 = int_to_ptr.vmem [resolvable:$true] %s35
      %41 = dma.hbm_to_vmem [thread:$0]  %s1, 512, %s36, [#allocation6], 64, 64, 4
    $region9: #{decoder_forward.1} parent=1 // pred_fallthru
      _
    // Predicated region
    $region10: #{decoder_forward.1} parent=1 // pred_check
      _
    $region11: #{decoder_forward.1} parent=1 // pred_check_branch
      %43 = sbr.rel (0) target = $region13
    $region12: #{decoder_forward.1} parent=1 // pred_region
      %s45 = ssub.s32 16, 16
      %46 = vsyncadd [#allocation6], %s45
      %s48 = sshll.u32 [#allocation7], 4
      %s49 = int_to_ptr.vmem [resolvable:$true] %s48
      %51 = dma.hbm_to_vmem [thread:$0]  %s2, 16, %s49, [#allocation6]
    $region13: #{decoder_forward.1} parent=1 // pred_fallthru
      _
    // Predicated region
    $region14: #{decoder_forward.1} parent=1 // pred_check
      _
    $region15: #{decoder_forward.1} parent=1 // pred_check_branch
      %53 = sbr.rel (0) target = $region17
    $region16: #{decoder_forward.1} parent=1 // pred_region
      %s55 = ssub.s32 2048, 2048
      %56 = vsyncadd [#allocation9], %s55
      %s57 = sshll.u32 [#allocation8], 4
      %s58 = int_to_ptr.vmem [resolvable:$true] %s57
      %63 = dma.hbm_to_vmem [thread:$0]  %s3, 2048, %s58, [#allocation9], 128, 128, 8
    $region17: #{decoder_forward.1} parent=1 // pred_fallthru
      _
    // Predicated region
    $region18: #{decoder_forward.1} parent=1 // pred_check
      _
    $region19: #{decoder_forward.1} parent=1 // pred_check_branch
      %65 = sbr.rel (0) target = $region21
    $region20: #{decoder_forward.1} parent=1 // pred_region
      %s67 = ssub.s32 32, 32
      %68 = vsyncadd [#allocation9], %s67
      %s70 = sshll.u32 [#allocation10], 4
      %s71 = int_to_ptr.vmem [resolvable:$true] %s70
      %73 = dma.hbm_to_vmem [thread:$0]  %s4, 32, %s71, [#allocation9]
    $region21: #{decoder_forward.1} parent=1 // pred_fallthru
      _
    // Predicated region
    $region22: #{decoder_forward.1} parent=1 // pred_check
      _
    $region23: #{decoder_forward.1} parent=1 // pred_check_branch
      %75 = sbr.rel (0) target = $region25
    $region24: #{decoder_forward.1} parent=1 // pred_region
      %s77 = ssub.s32 8192, 8192
      %78 = vsyncadd [#allocation12], %s77
      %s79 = sshll.u32 [#allocation11], 4
      %s80 = int_to_ptr.vmem [resolvable:$true] %s79
      %85 = dma.hbm_to_vmem [thread:$0]  %s5, 8192, %s80, [#allocation12], 256, 256, 16
    $region25: #{decoder_forward.1} parent=1 // pred_fallthru
      _
    // Predicated region
    $region26: #{decoder_forward.1} parent=1 // pred_check
      _
    $region27: #{decoder_forward.1} parent=1 // pred_check_branch
      %87 = sbr.rel (0) target = $region29
    $region28: #{decoder_forward.1} parent=1 // pred_region
      %s89 = ssub.s32 64, 64
      %90 = vsyncadd [#allocation12], %s89
      %s92 = sshll.u32 [#allocation13], 4
      %s93 = int_to_ptr.vmem [resolvable:$true] %s92
      %95 = dma.hbm_to_vmem [thread:$0]  %s6, 64, %s93, [#allocation12]
    $region29: #{decoder_forward.1} parent=1 // pred_fallthru
      _
    // Predicated region
    $region30: #{decoder_forward.1} parent=1 // pred_check
      _
    $region31: #{decoder_forward.1} parent=1 // pred_check_branch
      %97 = sbr.rel (0) target = $region33
    $region32: #{decoder_forward.1} parent=1 // pred_region
      %s99 = ssub.s32 28672, 28672
      %100 = vsyncadd [#allocation15], %s99
      %s101 = sshll.u32 [#allocation14], 4
      %s102 = int_to_ptr.vmem [resolvable:$true] %s101
      %107 = dma.hbm_to_vmem [thread:$0]  %s7, 28672, %s102, [#allocation15], 448, 448, 28
    $region33: #{decoder_forward.1} parent=1 // pred_fallthru
      _
    // Predicated region
    $region34: #{decoder_forward.1} parent=1 // pred_check
      _
    $region35: #{decoder_forward.1} parent=1 // pred_check_branch
      %109 = sbr.rel (0) target = $region37
    $region36: #{decoder_forward.1} parent=1 // pred_region
      _
    $region37: #{decoder_forward.1} parent=1 // pred_fallthru
      _
    // Predicated region
    $region38: #{decoder_forward.1} parent=1 // pred_check
      _
    $region39: #{decoder_forward.1} parent=1 // pred_check_branch
      %111 = sbr.rel (0) target = $region41
    $region40: #{decoder_forward.1} parent=1 // pred_region
      %112 = dma.done [#allocation3], 128
    $region41: #{decoder_forward.1} parent=1 // pred_fallthru
      _
    // Predicated region
    $region42: #{decoder_forward.1} parent=1 // pred_check
      _
    $region43: #{decoder_forward.1} parent=1 // pred_check_branch
      %114 = sbr.rel (0) target = $region45
    $region44: #{decoder_forward.1} parent=1 // pred_region
      %115 = dma.done [#allocation6], 512
    $region45: #{decoder_forward.1} parent=1 // pred_fallthru
      _
    // Predicated region
    $region46: #{decoder_forward.1} parent=1 // pred_check
      _
    $region47: #{decoder_forward.1} parent=1 // pred_check_branch
      %117 = sbr.rel (0) target = $region49
    $region48: #{decoder_forward.1} parent=1 // pred_region
      %118 = dma.done [#allocation6], 16
    $region49: #{decoder_forward.1} parent=1 // pred_fallthru
      _
    // Predicated region
    $region50: #{decoder_forward.1} parent=1 // pred_check
      _
    $region51: #{decoder_forward.1} parent=1 // pred_check_branch
      %120 = sbr.rel (0) target = $region53
    $region52: #{decoder_forward.1} parent=1 // pred_region
      %121 = dma.done [#allocation9], 2048
    $region53: #{decoder_forward.1} parent=1 // pred_fallthru
      _
    // Predicated region
    $region54: #{decoder_forward.1} parent=1 // pred_check
      _
    $region55: #{decoder_forward.1} parent=1 // pred_check_branch
      %123 = sbr.rel (0) target = $region57
    $region56: #{decoder_forward.1} parent=1 // pred_region
      %124 = dma.done [#allocation9], 32
    $region57: #{decoder_forward.1} parent=1 // pred_fallthru
      _
    // Predicated region
    $region58: #{decoder_forward.1} parent=1 // pred_check
      _
    $region59: #{decoder_forward.1} parent=1 // pred_check_branch
      %126 = sbr.rel (0) target = $region61
    $region60: #{decoder_forward.1} parent=1 // pred_region
      %127 = dma.done [#allocation12], 8192
    $region61: #{decoder_forward.1} parent=1 // pred_fallthru
      _
    // Predicated region
    $region62: #{decoder_forward.1} parent=1 // pred_check
      _
    $region63: #{decoder_forward.1} parent=1 // pred_check_branch
      %129 = sbr.rel (0) target = $region65
    $region64: #{decoder_forward.1} parent=1 // pred_region
      %130 = dma.done [#allocation12], 64
    $region65: #{decoder_forward.1} parent=1 // pred_fallthru
      _
    // Predicated region
    $region66: #{decoder_forward.1} parent=1 // pred_check
      _
    $region67: #{decoder_forward.1} parent=1 // pred_check_branch
      %132 = sbr.rel (0) target = $region69
    $region68: #{decoder_forward.1} parent=1 // pred_region
      %133 = dma.done [#allocation15], 28672
    $region69: #{decoder_forward.1} parent=1 // pred_fallthru
      _
    %v135 = vld [vmem:[#allocation2] sm:$0xff]
    %v136 = vpack.c.bf16 %v135, %v135
    %v137 = vld [vmem:[#allocation5] sm:$0xf]
    %v138 = vld [vmem:[#allocation5 + $0x4] sm:$0xf]
    %v139 = vld [vmem:[#allocation5 + $0x8] sm:$0xf]
    %v140 = vld [vmem:[#allocation5 + $0xc] sm:$0xf]
    %v141 = vld [vmem:[#allocation5 + $0x10] sm:$0xf]
    %v142 = vld [vmem:[#allocation5 + $0x14] sm:$0xf]
    %v143 = vld [vmem:[#allocation5 + $0x18] sm:$0xf]
    %v144 = vld [vmem:[#allocation5 + $0x1c] sm:$0xf]
    %v145 = vld [vmem:[#allocation7] sm:$0x1]
    %v147 = vlaneseq
    %v148 = vshrl.u32 %v147, 7
    %v149 = vsub.s32 0, %v148
    %v150 = vrot.slane %v145, %v149
    %v160 = vunpack.c.l.b16 %v137
    %v161 = vunpack.c.l.b16 %v138
    %v162 = vunpack.c.l.b16 %v139
    %v163 = vunpack.c.l.b16 %v140
    %v164 = vunpack.c.l.b16 %v141
    %v165 = vunpack.c.l.b16 %v142
    %v166 = vunpack.c.l.b16 %v143
    %v167 = vunpack.c.l.b16 %v144
    %v168 = vpack.c.b16 %v161, %v160
    %v169 = vpack.c.b16 %v163, %v162
    %v170 = vpack.c.b16 %v165, %v164
    %v171 = vpack.c.b16 %v167, %v166
    %vm176 = vcmask 523264
    %v178 = vsel %vm176, %v136, 0
    %180 = vmatprep.subr.bf16.mxu0 0
    %181 = vmatpush1.bf16.msra.mxu0 0
    %182 = vmatprep.subr.bf16.mxu0 0
    %183 = vmatpush1.bf16.msra.mxu0 0
    %184 = vmatprep.subr.bf16.mxu0 0
    %185 = vmatpush1.bf16.msra.mxu0 0
    %186 = vmatprep.subr.bf16.mxu0 0
    %187 = vmatpush1.bf16.msra.mxu0 0
    %188 = vmatprep.subr.bf16.mxu0 0
    %189 = vmatpush1.bf16.msra.mxu0 %v171
    %190 = vmatprep.subr.bf16.mxu0 0
    %191 = vmatpush1.bf16.msra.mxu0 %v170
    %192 = vmatprep.subr.bf16.mxu0 0
    %193 = vmatpush1.bf16.msra.mxu0 %v169
    %194 = vmatprep.subr.bf16.mxu0 0
    %195 = vmatpush1.bf16.msra.mxu0 %v168
    %196 = vmatprep.subr.bf16.mxu0 0
    %197 = vmatpush2.bf16.msra.mxu0 0
    %198 = vmatprep.subr.bf16.mxu0 0
    %199 = vmatpush2.bf16.msra.mxu0 0
    %200 = vmatprep.subr.bf16.mxu0 0
    %201 = vmatpush2.bf16.msra.mxu0 0
    %202 = vmatprep.subr.bf16.mxu0 0
    %203 = vmatpush2.bf16.msra.mxu0 0
    %204 = vmatprep.subr.bf16.mxu0 0
    %205 = vmatpush2.bf16.msra.mxu0 0
    %206 = vmatprep.subr.bf16.mxu0 0
    %207 = vmatpush2.bf16.msra.mxu0 0
    %208 = vmatprep.subr.bf16.mxu0 0
    %209 = vmatpush2.bf16.msra.mxu0 0
    %210 = vmatprep.subr.bf16.mxu0 0
    %211 = vmatpush2.bf16.msra.mxu0 0
    %212 = vmatprep.mubr.bf16.mxu0 0
    %213 = vmatmul.mubr.bf16.gmra.mxu0 %v178
    %v214 = vpop.f32.mrf.mxu0
    %v215 = vadd.f32 %v150, %v214
    %v216 = vpop.f32.mrf.mxu0
    %v217 = vpop.f32.mrf.mxu0
    %v218 = vpop.f32.mrf.mxu0
    %219 = vdwg.mxu0
    %v220 = vmax.f32 %v215, 0.0
    %v221 = vpack.c.bf16 %v220, %v220
    %v222 = vld [vmem:[#allocation8] sm:$0xff]
    %v223 = vld [vmem:[#allocation8 + $0x8] sm:$0xff]
    %v224 = vld [vmem:[#allocation8 + $0x10] sm:$0xff]
    %v225 = vld [vmem:[#allocation8 + $0x18] sm:$0xff]
    %v226 = vld [vmem:[#allocation8 + $0x20] sm:$0xff]
    %v227 = vld [vmem:[#allocation8 + $0x28] sm:$0xff]
    %v228 = vld [vmem:[#allocation8 + $0x30] sm:$0xff]
    %v229 = vld [vmem:[#allocation8 + $0x38] sm:$0xff]
    %v230 = vld [vmem:[#allocation8 + $0x40] sm:$0xff]
    %v231 = vld [vmem:[#allocation8 + $0x48] sm:$0xff]
    %v232 = vld [vmem:[#allocation8 + $0x50] sm:$0xff]
    %v233 = vld [vmem:[#allocation8 + $0x58] sm:$0xff]
    %v234 = vld [vmem:[#allocation8 + $0x60] sm:$0xff]
    %v235 = vld [vmem:[#allocation8 + $0x68] sm:$0xff]
    %v236 = vld [vmem:[#allocation8 + $0x70] sm:$0xff]
    %v237 = vld [vmem:[#allocation8 + $0x78] sm:$0xff]
    %v238 = vld [vmem:[#allocation10] sm:$0x3]
    %v240 = vlaneseq
    %v241 = vshrl.u32 %v240, 7
    %v242 = vsub.s32 0, %v241
    %v243 = vrot.slane %v238, %v242
    %v244 = vlaneseq
    %v245 = vshrl.u32 %v244, 7
    %v246 = vsub.s32 1, %v245
    %v247 = vrot.slane %v238, %v246
    %v266 = vunpack.c.l.b16 %v222
    %v267 = vunpack.c.h.b16 %v222
    %v268 = vunpack.c.l.b16 %v223
    %v269 = vunpack.c.h.b16 %v223
    %v270 = vunpack.c.l.b16 %v224
    %v271 = vunpack.c.h.b16 %v224
    %v272 = vunpack.c.l.b16 %v225
    %v273 = vunpack.c.h.b16 %v225
    %v274 = vunpack.c.l.b16 %v226
    %v275 = vunpack.c.h.b16 %v226
    %v276 = vunpack.c.l.b16 %v227
    %v277 = vunpack.c.h.b16 %v227
    %v278 = vunpack.c.l.b16 %v228
    %v279 = vunpack.c.h.b16 %v228
    %v280 = vunpack.c.l.b16 %v229
    %v281 = vunpack.c.h.b16 %v229
    %v282 = vunpack.c.l.b16 %v230
    %v283 = vunpack.c.h.b16 %v230
    %v284 = vunpack.c.l.b16 %v231
    %v285 = vunpack.c.h.b16 %v231
    %v286 = vunpack.c.l.b16 %v232
    %v287 = vunpack.c.h.b16 %v232
    %v288 = vunpack.c.l.b16 %v233
    %v289 = vunpack.c.h.b16 %v233
    %v290 = vunpack.c.l.b16 %v234
    %v291 = vunpack.c.h.b16 %v234
    %v292 = vunpack.c.l.b16 %v235
    %v293 = vunpack.c.h.b16 %v235
    %v294 = vunpack.c.l.b16 %v236
    %v295 = vunpack.c.h.b16 %v236
    %v296 = vunpack.c.l.b16 %v237
    %v297 = vunpack.c.h.b16 %v237
    %v298 = vpack.c.b16 %v268, %v266
    %v299 = vpack.c.b16 %v269, %v267
    %v300 = vpack.c.b16 %v272, %v270
    %v301 = vpack.c.b16 %v273, %v271
    %v302 = vpack.c.b16 %v276, %v274
    %v303 = vpack.c.b16 %v277, %v275
    %v304 = vpack.c.b16 %v280, %v278
    %v305 = vpack.c.b16 %v281, %v279
    %v306 = vpack.c.b16 %v284, %v282
    %v307 = vpack.c.b16 %v285, %v283
    %v308 = vpack.c.b16 %v288, %v286
    %v309 = vpack.c.b16 %v289, %v287
    %v310 = vpack.c.b16 %v292, %v290
    %v311 = vpack.c.b16 %v293, %v291
    %v312 = vpack.c.b16 %v296, %v294
    %v313 = vpack.c.b16 %v297, %v295
    %330 = vmatprep.subr.bf16.mxu0 %v313
    %331 = vmatpush1.bf16.msra.mxu0 %v312
    %332 = vmatprep.subr.bf16.mxu0 %v311
    %333 = vmatpush1.bf16.msra.mxu0 %v310
    %334 = vmatprep.subr.bf16.mxu0 %v309
    %335 = vmatpush1.bf16.msra.mxu0 %v308
    %336 = vmatprep.subr.bf16.mxu0 %v307
    %337 = vmatpush1.bf16.msra.mxu0 %v306
    %338 = vmatprep.subr.bf16.mxu0 %v305
    %339 = vmatpush1.bf16.msra.mxu0 %v304
    %340 = vmatprep.subr.bf16.mxu0 %v303
    %341 = vmatpush1.bf16.msra.mxu0 %v302
    %342 = vmatprep.subr.bf16.mxu0 %v301
    %343 = vmatpush1.bf16.msra.mxu0 %v300
    %344 = vmatprep.subr.bf16.mxu0 %v299
    %345 = vmatpush1.bf16.msra.mxu0 %v298
    %346 = vmatprep.subr.bf16.mxu0 0
    %347 = vmatpush2.bf16.msra.mxu0 0
    %348 = vmatprep.subr.bf16.mxu0 0
    %349 = vmatpush2.bf16.msra.mxu0 0
    %350 = vmatprep.subr.bf16.mxu0 0
    %351 = vmatpush2.bf16.msra.mxu0 0
    %352 = vmatprep.subr.bf16.mxu0 0
    %353 = vmatpush2.bf16.msra.mxu0 0
    %354 = vmatprep.subr.bf16.mxu0 0
    %355 = vmatpush2.bf16.msra.mxu0 0
    %356 = vmatprep.subr.bf16.mxu0 0
    %357 = vmatpush2.bf16.msra.mxu0 0
    %358 = vmatprep.subr.bf16.mxu0 0
    %359 = vmatpush2.bf16.msra.mxu0 0
    %360 = vmatprep.subr.bf16.mxu0 0
    %361 = vmatpush2.bf16.msra.mxu0 0
    %362 = vmatprep.mubr.bf16.mxu0 0
    %363 = vmatmul.mubr.bf16.gmra.mxu0 %v221
    %v364 = vpop.f32.mrf.mxu0
    %v365 = vadd.f32 %v243, %v364
    %v366 = vpop.f32.mrf.mxu0
    %v367 = vadd.f32 %v247, %v366
    %v368 = vpop.f32.mrf.mxu0
    %v369 = vpop.f32.mrf.mxu0
    %370 = vdwg.mxu0
    %v371 = vmax.f32 %v365, 0.0
    %v372 = vmax.f32 %v367, 0.0
    %v373 = vpack.c.bf16 %v371, %v371
    %v374 = vpack.c.bf16 %v372, %v372
    %v375 = vld [vmem:[#allocation11] sm:$0xff]
    %v376 = vld [vmem:[#allocation11 + $0x8] sm:$0xff]
    %v377 = vld [vmem:[#allocation11 + $0x10] sm:$0xff]
    %v378 = vld [vmem:[#allocation11 + $0x18] sm:$0xff]
    %v379 = vld [vmem:[#allocation11 + $0x20] sm:$0xff]
    %v380 = vld [vmem:[#allocation11 + $0x28] sm:$0xff]
    %v381 = vld [vmem:[#allocation11 + $0x30] sm:$0xff]
    %v382 = vld [vmem:[#allocation11 + $0x38] sm:$0xff]
    %v383 = vld [vmem:[#allocation11 + $0x40] sm:$0xff]
    %v384 = vld [vmem:[#allocation11 + $0x48] sm:$0xff]
    %v385 = vld [vmem:[#allocation11 + $0x50] sm:$0xff]
    %v386 = vld [vmem:[#allocation11 + $0x58] sm:$0xff]
    %v387 = vld [vmem:[#allocation11 + $0x60] sm:$0xff]
    %v388 = vld [vmem:[#allocation11 + $0x68] sm:$0xff]
    %v389 = vld [vmem:[#allocation11 + $0x70] sm:$0xff]
    %v390 = vld [vmem:[#allocation11 + $0x78] sm:$0xff]
    %v391 = vld [vmem:[#allocation11 + $0x80] sm:$0xff]
    %v392 = vld [vmem:[#allocation11 + $0x88] sm:$0xff]
    %v393 = vld [vmem:[#allocation11 + $0x90] sm:$0xff]
    %v394 = vld [vmem:[#allocation11 + $0x98] sm:$0xff]
    %v395 = vld [vmem:[#allocation11 + $0xa0] sm:$0xff]
    %v396 = vld [vmem:[#allocation11 + $0xa8] sm:$0xff]
    %v397 = vld [vmem:[#allocation11 + $0xb0] sm:$0xff]
    %v398 = vld [vmem:[#allocation11 + $0xb8] sm:$0xff]
    %v399 = vld [vmem:[#allocation11 + $0xc0] sm:$0xff]
    %v400 = vld [vmem:[#allocation11 + $0xc8] sm:$0xff]
    %v401 = vld [vmem:[#allocation11 + $0xd0] sm:$0xff]
    %v402 = vld [vmem:[#allocation11 + $0xd8] sm:$0xff]
    %v403 = vld [vmem:[#allocation11 + $0xe0] sm:$0xff]
    %v404 = vld [vmem:[#allocation11 + $0xe8] sm:$0xff]
    %v405 = vld [vmem:[#allocation11 + $0xf0] sm:$0xff]
    %v406 = vld [vmem:[#allocation11 + $0xf8] sm:$0xff]
    %v407 = vld [vmem:[#allocation11 + $0x100] sm:$0xff]
    %v408 = vld [vmem:[#allocation11 + $0x108] sm:$0xff]
    %v409 = vld [vmem:[#allocation11 + $0x110] sm:$0xff]
    %v410 = vld [vmem:[#allocation11 + $0x118] sm:$0xff]
    %v411 = vld [vmem:[#allocation11 + $0x120] sm:$0xff]
    %v412 = vld [vmem:[#allocation11 + $0x128] sm:$0xff]
    %v413 = vld [vmem:[#allocation11 + $0x130] sm:$0xff]
    %v414 = vld [vmem:[#allocation11 + $0x138] sm:$0xff]
    %v415 = vld [vmem:[#allocation11 + $0x140] sm:$0xff]
    %v416 = vld [vmem:[#allocation11 + $0x148] sm:$0xff]
    %v417 = vld [vmem:[#allocation11 + $0x150] sm:$0xff]
    %v418 = vld [vmem:[#allocation11 + $0x158] sm:$0xff]
    %v419 = vld [vmem:[#allocation11 + $0x160] sm:$0xff]
    %v420 = vld [vmem:[#allocation11 + $0x168] sm:$0xff]
    %v421 = vld [vmem:[#allocation11 + $0x170] sm:$0xff]
    %v422 = vld [vmem:[#allocation11 + $0x178] sm:$0xff]
    %v423 = vld [vmem:[#allocation11 + $0x180] sm:$0xff]
    %v424 = vld [vmem:[#allocation11 + $0x188] sm:$0xff]
    %v425 = vld [vmem:[#allocation11 + $0x190] sm:$0xff]
    %v426 = vld [vmem:[#allocation11 + $0x198] sm:$0xff]
    %v427 = vld [vmem:[#allocation11 + $0x1a0] sm:$0xff]
    %v428 = vld [vmem:[#allocation11 + $0x1a8] sm:$0xff]
    %v429 = vld [vmem:[#allocation11 + $0x1b0] sm:$0xff]
    %v430 = vld [vmem:[#allocation11 + $0x1b8] sm:$0xff]
    %v431 = vld [vmem:[#allocation11 + $0x1c0] sm:$0xff]
    %v432 = vld [vmem:[#allocation11 + $0x1c8] sm:$0xff]
    %v433 = vld [vmem:[#allocation11 + $0x1d0] sm:$0xff]
    %v434 = vld [vmem:[#allocation11 + $0x1d8] sm:$0xff]
    %v435 = vld [vmem:[#allocation11 + $0x1e0] sm:$0xff]
    %v436 = vld [vmem:[#allocation11 + $0x1e8] sm:$0xff]
    %v437 = vld [vmem:[#allocation11 + $0x1f0] sm:$0xff]
    %v438 = vld [vmem:[#allocation11 + $0x1f8] sm:$0xff]
    %v439 = vld [vmem:[#allocation13] sm:$0xf]
    %v441 = vlaneseq
    %v442 = vshrl.u32 %v441, 7
    %v443 = vsub.s32 0, %v442
    %v444 = vrot.slane %v439, %v443
    %v445 = vlaneseq
    %v446 = vshrl.u32 %v445, 7
    %v447 = vsub.s32 1, %v446
    %v448 = vrot.slane %v439, %v447
    %v449 = vlaneseq
    %v450 = vshrl.u32 %v449, 7
    %v451 = vsub.s32 2, %v450
    %v452 = vrot.slane %v439, %v451
    %v453 = vlaneseq
    %v454 = vshrl.u32 %v453, 7
    %v455 = vsub.s32 3, %v454
    %v456 = vrot.slane %v439, %v455
    %v525 = vunpack.c.l.b16 %v375
    %v526 = vunpack.c.h.b16 %v375
    %v527 = vunpack.c.l.b16 %v376
    %v528 = vunpack.c.h.b16 %v376
    %v529 = vunpack.c.l.b16 %v377
    %v530 = vunpack.c.h.b16 %v377
    %v531 = vunpack.c.l.b16 %v378
    %v532 = vunpack.c.h.b16 %v378
    %v533 = vunpack.c.l.b16 %v379
    %v534 = vunpack.c.h.b16 %v379
    %v535 = vunpack.c.l.b16 %v380
    %v536 = vunpack.c.h.b16 %v380
    %v537 = vunpack.c.l.b16 %v381
    %v538 = vunpack.c.h.b16 %v381
    %v539 = vunpack.c.l.b16 %v382
    %v540 = vunpack.c.h.b16 %v382
    %v541 = vunpack.c.l.b16 %v383
    %v542 = vunpack.c.h.b16 %v383
    %v543 = vunpack.c.l.b16 %v384
    %v544 = vunpack.c.h.b16 %v384
    %v545 = vunpack.c.l.b16 %v385
    %v546 = vunpack.c.h.b16 %v385
    %v547 = vunpack.c.l.b16 %v386
    %v548 = vunpack.c.h.b16 %v386
    %v549 = vunpack.c.l.b16 %v387
    %v550 = vunpack.c.h.b16 %v387
    %v551 = vunpack.c.l.b16 %v388
    %v552 = vunpack.c.h.b16 %v388
    %v553 = vunpack.c.l.b16 %v389
    %v554 = vunpack.c.h.b16 %v389
    %v555 = vunpack.c.l.b16 %v390
    %v556 = vunpack.c.h.b16 %v390
    %v557 = vunpack.c.l.b16 %v391
    %v558 = vunpack.c.h.b16 %v391
    %v559 = vunpack.c.l.b16 %v392
    %v560 = vunpack.c.h.b16 %v392
    %v561 = vunpack.c.l.b16 %v393
    %v562 = vunpack.c.h.b16 %v393
    %v563 = vunpack.c.l.b16 %v394
    %v564 = vunpack.c.h.b16 %v394
    %v565 = vunpack.c.l.b16 %v395
    %v566 = vunpack.c.h.b16 %v395
    %v567 = vunpack.c.l.b16 %v396
    %v568 = vunpack.c.h.b16 %v396
    %v569 = vunpack.c.l.b16 %v397
    %v570 = vunpack.c.h.b16 %v397
    %v571 = vunpack.c.l.b16 %v398
    %v572 = vunpack.c.h.b16 %v398
    %v573 = vunpack.c.l.b16 %v399
    %v574 = vunpack.c.h.b16 %v399
    %v575 = vunpack.c.l.b16 %v400
    %v576 = vunpack.c.h.b16 %v400
    %v577 = vunpack.c.l.b16 %v401
    %v578 = vunpack.c.h.b16 %v401
    %v579 = vunpack.c.l.b16 %v402
    %v580 = vunpack.c.h.b16 %v402
    %v581 = vunpack.c.l.b16 %v403
    %v582 = vunpack.c.h.b16 %v403
    %v583 = vunpack.c.l.b16 %v404
    %v584 = vunpack.c.h.b16 %v404
    %v585 = vunpack.c.l.b16 %v405
    %v586 = vunpack.c.h.b16 %v405
    %v587 = vunpack.c.l.b16 %v406
    %v588 = vunpack.c.h.b16 %v406
    %v589 = vunpack.c.l.b16 %v407
    %v590 = vunpack.c.h.b16 %v407
    %v591 = vunpack.c.l.b16 %v408
    %v592 = vunpack.c.h.b16 %v408
    %v593 = vunpack.c.l.b16 %v409
    %v594 = vunpack.c.h.b16 %v409
    %v595 = vunpack.c.l.b16 %v410
    %v596 = vunpack.c.h.b16 %v410
    %v597 = vunpack.c.l.b16 %v411
    %v598 = vunpack.c.h.b16 %v411
    %v599 = vunpack.c.l.b16 %v412
    %v600 = vunpack.c.h.b16 %v412
    %v601 = vunpack.c.l.b16 %v413
    %v602 = vunpack.c.h.b16 %v413
    %v603 = vunpack.c.l.b16 %v414
    %v604 = vunpack.c.h.b16 %v414
    %v605 = vunpack.c.l.b16 %v415
    %v606 = vunpack.c.h.b16 %v415
    %v607 = vunpack.c.l.b16 %v416
    %v608 = vunpack.c.h.b16 %v416
    %v609 = vunpack.c.l.b16 %v417
    %v610 = vunpack.c.h.b16 %v417
    %v611 = vunpack.c.l.b16 %v418
    %v612 = vunpack.c.h.b16 %v418
    %v613 = vunpack.c.l.b16 %v419
    %v614 = vunpack.c.h.b16 %v419
    %v615 = vunpack.c.l.b16 %v420
    %v616 = vunpack.c.h.b16 %v420
    %v617 = vunpack.c.l.b16 %v421
    %v618 = vunpack.c.h.b16 %v421
    %v619 = vunpack.c.l.b16 %v422
    %v620 = vunpack.c.h.b16 %v422
    %v621 = vunpack.c.l.b16 %v423
    %v622 = vunpack.c.h.b16 %v423
    %v623 = vunpack.c.l.b16 %v424
    %v624 = vunpack.c.h.b16 %v424
    %v625 = vunpack.c.l.b16 %v425
    %v626 = vunpack.c.h.b16 %v425
    %v627 = vunpack.c.l.b16 %v426
    %v628 = vunpack.c.h.b16 %v426
    %v629 = vunpack.c.l.b16 %v427
    %v630 = vunpack.c.h.b16 %v427
    %v631 = vunpack.c.l.b16 %v428
    %v632 = vunpack.c.h.b16 %v428
    %v633 = vunpack.c.l.b16 %v429
    %v634 = vunpack.c.h.b16 %v429
    %v635 = vunpack.c.l.b16 %v430
    %v636 = vunpack.c.h.b16 %v430
    %v637 = vunpack.c.l.b16 %v431
    %v638 = vunpack.c.h.b16 %v431
    %v639 = vunpack.c.l.b16 %v432
    %v640 = vunpack.c.h.b16 %v432
    %v641 = vunpack.c.l.b16 %v433
    %v642 = vunpack.c.h.b16 %v433
    %v643 = vunpack.c.l.b16 %v434
    %v644 = vunpack.c.h.b16 %v434
    %v645 = vunpack.c.l.b16 %v435
    %v646 = vunpack.c.h.b16 %v435
    %v647 = vunpack.c.l.b16 %v436
    %v648 = vunpack.c.h.b16 %v436
    %v649 = vunpack.c.l.b16 %v437
    %v650 = vunpack.c.h.b16 %v437
    %v651 = vunpack.c.l.b16 %v438
    %v652 = vunpack.c.h.b16 %v438
    %v653 = vpack.c.b16 %v529, %v525
    %v654 = vpack.c.b16 %v530, %v526
    %v655 = vpack.c.b16 %v531, %v527
    %v656 = vpack.c.b16 %v532, %v528
    %v657 = vpack.c.b16 %v537, %v533
    %v658 = vpack.c.b16 %v538, %v534
    %v659 = vpack.c.b16 %v539, %v535
    %v660 = vpack.c.b16 %v540, %v536
    %v661 = vpack.c.b16 %v545, %v541
    %v662 = vpack.c.b16 %v546, %v542
    %v663 = vpack.c.b16 %v547, %v543
    %v664 = vpack.c.b16 %v548, %v544
    %v665 = vpack.c.b16 %v553, %v549
    %v666 = vpack.c.b16 %v554, %v550
    %v667 = vpack.c.b16 %v555, %v551
    %v668 = vpack.c.b16 %v556, %v552
    %v669 = vpack.c.b16 %v561, %v557
    %v670 = vpack.c.b16 %v562, %v558
    %v671 = vpack.c.b16 %v563, %v559
    %v672 = vpack.c.b16 %v564, %v560
    %v673 = vpack.c.b16 %v569, %v565
    %v674 = vpack.c.b16 %v570, %v566
    %v675 = vpack.c.b16 %v571, %v567
    %v676 = vpack.c.b16 %v572, %v568
    %v677 = vpack.c.b16 %v577, %v573
    %v678 = vpack.c.b16 %v578, %v574
    %v679 = vpack.c.b16 %v579, %v575
    %v680 = vpack.c.b16 %v580, %v576
    %v681 = vpack.c.b16 %v585, %v581
    %v682 = vpack.c.b16 %v586, %v582
    %v683 = vpack.c.b16 %v587, %v583
    %v684 = vpack.c.b16 %v588, %v584
    %v685 = vpack.c.b16 %v593, %v589
    %v686 = vpack.c.b16 %v594, %v590
    %v687 = vpack.c.b16 %v595, %v591
    %v688 = vpack.c.b16 %v596, %v592
    %v689 = vpack.c.b16 %v601, %v597
    %v690 = vpack.c.b16 %v602, %v598
    %v691 = vpack.c.b16 %v603, %v599
    %v692 = vpack.c.b16 %v604, %v600
    %v693 = vpack.c.b16 %v609, %v605
    %v694 = vpack.c.b16 %v610, %v606
    %v695 = vpack.c.b16 %v611, %v607
    %v696 = vpack.c.b16 %v612, %v608
    %v697 = vpack.c.b16 %v617, %v613
    %v698 = vpack.c.b16 %v618, %v614
    %v699 = vpack.c.b16 %v619, %v615
    %v700 = vpack.c.b16 %v620, %v616
    %v701 = vpack.c.b16 %v625, %v621
    %v702 = vpack.c.b16 %v626, %v622
    %v703 = vpack.c.b16 %v627, %v623
    %v704 = vpack.c.b16 %v628, %v624
    %v705 = vpack.c.b16 %v633, %v629
    %v706 = vpack.c.b16 %v634, %v630
    %v707 = vpack.c.b16 %v635, %v631
    %v708 = vpack.c.b16 %v636, %v632
    %v709 = vpack.c.b16 %v641, %v637
    %v710 = vpack.c.b16 %v642, %v638
    %v711 = vpack.c.b16 %v643, %v639
    %v712 = vpack.c.b16 %v644, %v640
    %v713 = vpack.c.b16 %v649, %v645
    %v714 = vpack.c.b16 %v650, %v646
    %v715 = vpack.c.b16 %v651, %v647
    %v716 = vpack.c.b16 %v652, %v648
    %781 = vmatprep.subr.bf16.mxu0 %v682
    %782 = vmatpush1.bf16.msra.mxu0 %v681
    %783 = vmatprep.subr.bf16.mxu0 %v678
    %784 = vmatpush1.bf16.msra.mxu0 %v677
    %785 = vmatprep.subr.bf16.mxu0 %v674
    %786 = vmatpush1.bf16.msra.mxu0 %v673
    %787 = vmatprep.subr.bf16.mxu0 %v670
    %788 = vmatpush1.bf16.msra.mxu0 %v669
    %789 = vmatprep.subr.bf16.mxu0 %v666
    %790 = vmatpush1.bf16.msra.mxu0 %v665
    %791 = vmatprep.subr.bf16.mxu0 %v662
    %792 = vmatpush1.bf16.msra.mxu0 %v661
    %793 = vmatprep.subr.bf16.mxu0 %v658
    %794 = vmatpush1.bf16.msra.mxu0 %v657
    %795 = vmatprep.subr.bf16.mxu0 %v654
    %796 = vmatpush1.bf16.msra.mxu0 %v653
    %797 = vmatprep.subr.bf16.mxu0 %v714
    %798 = vmatpush2.bf16.msra.mxu0 %v713
    %799 = vmatprep.subr.bf16.mxu0 %v710
    %800 = vmatpush2.bf16.msra.mxu0 %v709
    %801 = vmatprep.subr.bf16.mxu0 %v706
    %802 = vmatpush2.bf16.msra.mxu0 %v705
    %803 = vmatprep.subr.bf16.mxu0 %v702
    %804 = vmatpush2.bf16.msra.mxu0 %v701
    %805 = vmatprep.subr.bf16.mxu0 %v698
    %806 = vmatpush2.bf16.msra.mxu0 %v697
    %807 = vmatprep.subr.bf16.mxu0 %v694
    %808 = vmatpush2.bf16.msra.mxu0 %v693
    %809 = vmatprep.subr.bf16.mxu0 %v690
    %810 = vmatpush2.bf16.msra.mxu0 %v689
    %811 = vmatprep.subr.bf16.mxu0 %v686
    %812 = vmatpush2.bf16.msra.mxu0 %v685
    %813 = vmatprep.mubr.bf16.mxu0 %v374
    %814 = vmatmul.mubr.bf16.gmra.mxu0 %v373
    %v815 = vpop.f32.mrf.mxu0
    %v816 = vadd.f32 %v444, %v815
    %v817 = vpop.f32.mrf.mxu0
    %v818 = vadd.f32 %v448, %v817
    %v819 = vpop.f32.mrf.mxu0
    %v820 = vpop.f32.mrf.mxu0
    %821 = vdwg.mxu0
    %822 = vmatprep.subr.bf16.mxu0 %v684
    %823 = vmatpush1.bf16.msra.mxu0 %v683
    %824 = vmatprep.subr.bf16.mxu0 %v680
    %825 = vmatpush1.bf16.msra.mxu0 %v679
    %826 = vmatprep.subr.bf16.mxu0 %v676
    %827 = vmatpush1.bf16.msra.mxu0 %v675
    %828 = vmatprep.subr.bf16.mxu0 %v672
    %829 = vmatpush1.bf16.msra.mxu0 %v671
    %830 = vmatprep.subr.bf16.mxu0 %v668
    %831 = vmatpush1.bf16.msra.mxu0 %v667
    %832 = vmatprep.subr.bf16.mxu0 %v664
    %833 = vmatpush1.bf16.msra.mxu0 %v663
    %834 = vmatprep.subr.bf16.mxu0 %v660
    %835 = vmatpush1.bf16.msra.mxu0 %v659
    %836 = vmatprep.subr.bf16.mxu0 %v656
    %837 = vmatpush1.bf16.msra.mxu0 %v655
    %838 = vmatprep.subr.bf16.mxu0 %v716
    %839 = vmatpush2.bf16.msra.mxu0 %v715
    %840 = vmatprep.subr.bf16.mxu0 %v712
    %841 = vmatpush2.bf16.msra.mxu0 %v711
    %842 = vmatprep.subr.bf16.mxu0 %v708
    %843 = vmatpush2.bf16.msra.mxu0 %v707
    %844 = vmatprep.subr.bf16.mxu0 %v704
    %845 = vmatpush2.bf16.msra.mxu0 %v703
    %846 = vmatprep.subr.bf16.mxu0 %v700
    %847 = vmatpush2.bf16.msra.mxu0 %v699
    %848 = vmatprep.subr.bf16.mxu0 %v696
    %849 = vmatpush2.bf16.msra.mxu0 %v695
    %850 = vmatprep.subr.bf16.mxu0 %v692
    %851 = vmatpush2.bf16.msra.mxu0 %v691
    %852 = vmatprep.subr.bf16.mxu0 %v688
    %853 = vmatpush2.bf16.msra.mxu0 %v687
    %854 = vmatprep.mubr.bf16.mxu0 %v374
    %855 = vmatmul.mubr.bf16.gmra.mxu0 %v373
    %v856 = vpop.f32.mrf.mxu0
    %v857 = vadd.f32 %v452, %v856
    %v858 = vpop.f32.mrf.mxu0
    %v859 = vadd.f32 %v456, %v858
    %v860 = vpop.f32.mrf.mxu0
    %v861 = vpop.f32.mrf.mxu0
    %862 = vdwg.mxu0
    %v863 = vmax.f32 %v816, 0.0
    %v864 = vmax.f32 %v818, 0.0
    %v865 = vmax.f32 %v857, 0.0
    %v866 = vmax.f32 %v859, 0.0
    %v867 = vpack.c.bf16 %v863, %v863
    %v868 = vpack.c.bf16 %v864, %v864
    %v869 = vpack.c.bf16 %v865, %v865
    %v870 = vpack.c.bf16 %v866, %v866
    %v871 = vld [vmem:[#allocation14] sm:$0xff]
    %v872 = vld [vmem:[#allocation14 + $0x8] sm:$0xff]
    %v873 = vld [vmem:[#allocation14 + $0x10] sm:$0xff]
    %v874 = vld [vmem:[#allocation14 + $0x18] sm:$0xf]
    %v875 = vld [vmem:[#allocation14 + $0x1c] sm:$0xff]
    %v876 = vld [vmem:[#allocation14 + $0x24] sm:$0xff]
    %v877 = vld [vmem:[#allocation14 + $0x2c] sm:$0xff]
    %v878 = vld [vmem:[#allocation14 + $0x34] sm:$0xf]
    %v879 = vld [vmem:[#allocation14 + $0x38] sm:$0xff]
    %v880 = vld [vmem:[#allocation14 + $0x40] sm:$0xff]
    %v881 = vld [vmem:[#allocation14 + $0x48] sm:$0xff]
    %v882 = vld [vmem:[#allocation14 + $0x50] sm:$0xf]
    %v883 = vld [vmem:[#allocation14 + $0x54] sm:$0xff]
    %v884 = vld [vmem:[#allocation14 + $0x5c] sm:$0xff]
    %v885 = vld [vmem:[#allocation14 + $0x64] sm:$0xff]
    %v886 = vld [vmem:[#allocation14 + $0x6c] sm:$0xf]
    %v887 = vld [vmem:[#allocation14 + $0x70] sm:$0xff]
    %v888 = vld [vmem:[#allocation14 + $0x78] sm:$0xff]
    %v889 = vld [vmem:[#allocation14 + $0x80] sm:$0xff]
    %v890 = vld [vmem:[#allocation14 + $0x88] sm:$0xf]
    %v891 = vld [vmem:[#allocation14 + $0x8c] sm:$0xff]
    %v892 = vld [vmem:[#allocation14 + $0x94] sm:$0xff]
    %v893 = vld [vmem:[#allocation14 + $0x9c] sm:$0xff]
    %v894 = vld [vmem:[#allocation14 + $0xa4] sm:$0xf]
    %v895 = vld [vmem:[#allocation14 + $0xa8] sm:$0xff]
    %v896 = vld [vmem:[#allocation14 + $0xb0] sm:$0xff]
    %v897 = vld [vmem:[#allocation14 + $0xb8] sm:$0xff]
    %v898 = vld [vmem:[#allocation14 + $0xc0] sm:$0xf]
    %v899 = vld [vmem:[#allocation14 + $0xc4] sm:$0xff]
    %v900 = vld [vmem:[#allocation14 + $0xcc] sm:$0xff]
    %v901 = vld [vmem:[#allocation14 + $0xd4] sm:$0xff]
    %v902 = vld [vmem:[#allocation14 + $0xdc] sm:$0xf]
    %v903 = vld [vmem:[#allocation14 + $0xe0] sm:$0xff]
    %v904 = vld [vmem:[#allocation14 + $0xe8] sm:$0xff]
    %v905 = vld [vmem:[#allocation14 + $0xf0] sm:$0xff]
    %v906 = vld [vmem:[#allocation14 + $0xf8] sm:$0xf]
    %v907 = vld [vmem:[#allocation14 + $0xfc] sm:$0xff]
    %v908 = vld [vmem:[#allocation14 + $0x104] sm:$0xff]
    %v909 = vld [vmem:[#allocation14 + $0x10c] sm:$0xff]
    %v910 = vld [vmem:[#allocation14 + $0x114] sm:$0xf]
    %v911 = vld [vmem:[#allocation14 + $0x118] sm:$0xff]
    %v912 = vld [vmem:[#allocation14 + $0x120] sm:$0xff]
    %v913 = vld [vmem:[#allocation14 + $0x128] sm:$0xff]
    %v914 = vld [vmem:[#allocation14 + $0x130] sm:$0xf]
    %v915 = vld [vmem:[#allocation14 + $0x134] sm:$0xff]
    %v916 = vld [vmem:[#allocation14 + $0x13c] sm:$0xff]
    %v917 = vld [vmem:[#allocation14 + $0x144] sm:$0xff]
    %v918 = vld [vmem:[#allocation14 + $0x14c] sm:$0xf]
    %v919 = vld [vmem:[#allocation14 + $0x150] sm:$0xff]
    %v920 = vld [vmem:[#allocation14 + $0x158] sm:$0xff]
    %v921 = vld [vmem:[#allocation14 + $0x160] sm:$0xff]
    %v922 = vld [vmem:[#allocation14 + $0x168] sm:$0xf]
    %v923 = vld [vmem:[#allocation14 + $0x16c] sm:$0xff]
    %v924 = vld [vmem:[#allocation14 + $0x174] sm:$0xff]
    %v925 = vld [vmem:[#allocation14 + $0x17c] sm:$0xff]
    %v926 = vld [vmem:[#allocation14 + $0x184] sm:$0xf]
    %v927 = vld [vmem:[#allocation14 + $0x188] sm:$0xff]
    %v928 = vld [vmem:[#allocation14 + $0x190] sm:$0xff]
    %v929 = vld [vmem:[#allocation14 + $0x198] sm:$0xff]
    %v930 = vld [vmem:[#allocation14 + $0x1a0] sm:$0xf]
    %v931 = vld [vmem:[#allocation14 + $0x1a4] sm:$0xff]
    %v932 = vld [vmem:[#allocation14 + $0x1ac] sm:$0xff]
    %v933 = vld [vmem:[#allocation14 + $0x1b4] sm:$0xff]
    %v934 = vld [vmem:[#allocation14 + $0x1bc] sm:$0xf]
    %v935 = vld [vmem:[#allocation14 + $0x1c0] sm:$0xff]
    %v936 = vld [vmem:[#allocation14 + $0x1c8] sm:$0xff]
    %v937 = vld [vmem:[#allocation14 + $0x1d0] sm:$0xff]
    %v938 = vld [vmem:[#allocation14 + $0x1d8] sm:$0xf]
    %v939 = vld [vmem:[#allocation14 + $0x1dc] sm:$0xff]
    %v940 = vld [vmem:[#allocation14 + $0x1e4] sm:$0xff]
    %v941 = vld [vmem:[#allocation14 + $0x1ec] sm:$0xff]
    %v942 = vld [vmem:[#allocation14 + $0x1f4] sm:$0xf]
    %v943 = vld [vmem:[#allocation14 + $0x1f8] sm:$0xff]
    %v944 = vld [vmem:[#allocation14 + $0x200] sm:$0xff]
    %v945 = vld [vmem:[#allocation14 + $0x208] sm:$0xff]
    %v946 = vld [vmem:[#allocation14 + $0x210] sm:$0xf]
    %v947 = vld [vmem:[#allocation14 + $0x214] sm:$0xff]
    %v948 = vld [vmem:[#allocation14 + $0x21c] sm:$0xff]
    %v949 = vld [vmem:[#allocation14 + $0x224] sm:$0xff]
    %v950 = vld [vmem:[#allocation14 + $0x22c] sm:$0xf]
    %v951 = vld [vmem:[#allocation14 + $0x230] sm:$0xff]
    %v952 = vld [vmem:[#allocation14 + $0x238] sm:$0xff]
    %v953 = vld [vmem:[#allocation14 + $0x240] sm:$0xff]
    %v954 = vld [vmem:[#allocation14 + $0x248] sm:$0xf]
    %v955 = vld [vmem:[#allocation14 + $0x24c] sm:$0xff]
    %v956 = vld [vmem:[#allocation14 + $0x254] sm:$0xff]
    %v957 = vld [vmem:[#allocation14 + $0x25c] sm:$0xff]
    %v958 = vld [vmem:[#allocation14 + $0x264] sm:$0xf]
    %v959 = vld [vmem:[#allocation14 + $0x268] sm:$0xff]
    %v960 = vld [vmem:[#allocation14 + $0x270] sm:$0xff]
    %v961 = vld [vmem:[#allocation14 + $0x278] sm:$0xff]
    %v962 = vld [vmem:[#allocation14 + $0x280] sm:$0xf]
    %v963 = vld [vmem:[#allocation14 + $0x284] sm:$0xff]
    %v964 = vld [vmem:[#allocation14 + $0x28c] sm:$0xff]
    %v965 = vld [vmem:[#allocation14 + $0x294] sm:$0xff]
    %v966 = vld [vmem:[#allocation14 + $0x29c] sm:$0xf]
    %v967 = vld [vmem:[#allocation14 + $0x2a0] sm:$0xff]
    %v968 = vld [vmem:[#allocation14 + $0x2a8] sm:$0xff]
    %v969 = vld [vmem:[#allocation14 + $0x2b0] sm:$0xff]
    %v970 = vld [vmem:[#allocation14 + $0x2b8] sm:$0xf]
    %v971 = vld [vmem:[#allocation14 + $0x2bc] sm:$0xff]
    %v972 = vld [vmem:[#allocation14 + $0x2c4] sm:$0xff]
    %v973 = vld [vmem:[#allocation14 + $0x2cc] sm:$0xff]
    %v974 = vld [vmem:[#allocation14 + $0x2d4] sm:$0xf]
    %v975 = vld [vmem:[#allocation14 + $0x2d8] sm:$0xff]
    %v976 = vld [vmem:[#allocation14 + $0x2e0] sm:$0xff]
    %v977 = vld [vmem:[#allocation14 + $0x2e8] sm:$0xff]
    %v978 = vld [vmem:[#allocation14 + $0x2f0] sm:$0xf]
    %v979 = vld [vmem:[#allocation14 + $0x2f4] sm:$0xff]
    %v980 = vld [vmem:[#allocation14 + $0x2fc] sm:$0xff]
    %v981 = vld [vmem:[#allocation14 + $0x304] sm:$0xff]
    %v982 = vld [vmem:[#allocation14 + $0x30c] sm:$0xf]
    %v983 = vld [vmem:[#allocation14 + $0x310] sm:$0xff]
    %v984 = vld [vmem:[#allocation14 + $0x318] sm:$0xff]
    %v985 = vld [vmem:[#allocation14 + $0x320] sm:$0xff]
    %v986 = vld [vmem:[#allocation14 + $0x328] sm:$0xf]
    %v987 = vld [vmem:[#allocation14 + $0x32c] sm:$0xff]
    %v988 = vld [vmem:[#allocation14 + $0x334] sm:$0xff]
    %v989 = vld [vmem:[#allocation14 + $0x33c] sm:$0xff]
    %v990 = vld [vmem:[#allocation14 + $0x344] sm:$0xf]
    %v991 = vld [vmem:[#allocation14 + $0x348] sm:$0xff]
    %v992 = vld [vmem:[#allocation14 + $0x350] sm:$0xff]
    %v993 = vld [vmem:[#allocation14 + $0x358] sm:$0xff]
    %v994 = vld [vmem:[#allocation14 + $0x360] sm:$0xf]
    %v995 = vld [vmem:[#allocation14 + $0x364] sm:$0xff]
    %v996 = vld [vmem:[#allocation14 + $0x36c] sm:$0xff]
    %v997 = vld [vmem:[#allocation14 + $0x374] sm:$0xff]
    %v998 = vld [vmem:[#allocation14 + $0x37c] sm:$0xf]
    %v999 = vld [vmem:[#allocation14 + $0x380] sm:$0xff]
    %v1000 = vld [vmem:[#allocation14 + $0x388] sm:$0xff]
    %v1001 = vld [vmem:[#allocation14 + $0x390] sm:$0xff]
    %v1002 = vld [vmem:[#allocation14 + $0x398] sm:$0xf]
    %v1003 = vld [vmem:[#allocation14 + $0x39c] sm:$0xff]
    %v1004 = vld [vmem:[#allocation14 + $0x3a4] sm:$0xff]
    %v1005 = vld [vmem:[#allocation14 + $0x3ac] sm:$0xff]
    %v1006 = vld [vmem:[#allocation14 + $0x3b4] sm:$0xf]
    %v1007 = vld [vmem:[#allocation14 + $0x3b8] sm:$0xff]
    %v1008 = vld [vmem:[#allocation14 + $0x3c0] sm:$0xff]
    %v1009 = vld [vmem:[#allocation14 + $0x3c8] sm:$0xff]
    %v1010 = vld [vmem:[#allocation14 + $0x3d0] sm:$0xf]
    %v1011 = vld [vmem:[#allocation14 + $0x3d4] sm:$0xff]
    %v1012 = vld [vmem:[#allocation14 + $0x3dc] sm:$0xff]
    %v1013 = vld [vmem:[#allocation14 + $0x3e4] sm:$0xff]
    %v1014 = vld [vmem:[#allocation14 + $0x3ec] sm:$0xf]
    %v1015 = vld [vmem:[#allocation14 + $0x3f0] sm:$0xff]
    %v1016 = vld [vmem:[#allocation14 + $0x3f8] sm:$0xff]
    %v1017 = vld [vmem:[#allocation14 + $0x400] sm:$0xff]
    %v1018 = vld [vmem:[#allocation14 + $0x408] sm:$0xf]
    %v1019 = vld [vmem:[#allocation14 + $0x40c] sm:$0xff]
    %v1020 = vld [vmem:[#allocation14 + $0x414] sm:$0xff]
    %v1021 = vld [vmem:[#allocation14 + $0x41c] sm:$0xff]
    %v1022 = vld [vmem:[#allocation14 + $0x424] sm:$0xf]
    %v1023 = vld [vmem:[#allocation14 + $0x428] sm:$0xff]
    %v1024 = vld [vmem:[#allocation14 + $0x430] sm:$0xff]
    %v1025 = vld [vmem:[#allocation14 + $0x438] sm:$0xff]
    %v1026 = vld [vmem:[#allocation14 + $0x440] sm:$0xf]
    %v1027 = vld [vmem:[#allocation14 + $0x444] sm:$0xff]
    %v1028 = vld [vmem:[#allocation14 + $0x44c] sm:$0xff]
    %v1029 = vld [vmem:[#allocation14 + $0x454] sm:$0xff]
    %v1030 = vld [vmem:[#allocation14 + $0x45c] sm:$0xf]
    %v1031 = vld [vmem:[#allocation14 + $0x460] sm:$0xff]
    %v1032 = vld [vmem:[#allocation14 + $0x468] sm:$0xff]
    %v1033 = vld [vmem:[#allocation14 + $0x470] sm:$0xff]
    %v1034 = vld [vmem:[#allocation14 + $0x478] sm:$0xf]
    %v1035 = vld [vmem:[#allocation14 + $0x47c] sm:$0xff]
    %v1036 = vld [vmem:[#allocation14 + $0x484] sm:$0xff]
    %v1037 = vld [vmem:[#allocation14 + $0x48c] sm:$0xff]
    %v1038 = vld [vmem:[#allocation14 + $0x494] sm:$0xf]
    %v1039 = vld [vmem:[#allocation14 + $0x498] sm:$0xff]
    %v1040 = vld [vmem:[#allocation14 + $0x4a0] sm:$0xff]
    %v1041 = vld [vmem:[#allocation14 + $0x4a8] sm:$0xff]
    %v1042 = vld [vmem:[#allocation14 + $0x4b0] sm:$0xf]
    %v1043 = vld [vmem:[#allocation14 + $0x4b4] sm:$0xff]
    %v1044 = vld [vmem:[#allocation14 + $0x4bc] sm:$0xff]
    %v1045 = vld [vmem:[#allocation14 + $0x4c4] sm:$0xff]
    %v1046 = vld [vmem:[#allocation14 + $0x4cc] sm:$0xf]
    %v1047 = vld [vmem:[#allocation14 + $0x4d0] sm:$0xff]
    %v1048 = vld [vmem:[#allocation14 + $0x4d8] sm:$0xff]
    %v1049 = vld [vmem:[#allocation14 + $0x4e0] sm:$0xff]
    %v1050 = vld [vmem:[#allocation14 + $0x4e8] sm:$0xf]
    %v1051 = vld [vmem:[#allocation14 + $0x4ec] sm:$0xff]
    %v1052 = vld [vmem:[#allocation14 + $0x4f4] sm:$0xff]
    %v1053 = vld [vmem:[#allocation14 + $0x4fc] sm:$0xff]
    %v1054 = vld [vmem:[#allocation14 + $0x504] sm:$0xf]
    %v1055 = vld [vmem:[#allocation14 + $0x508] sm:$0xff]
    %v1056 = vld [vmem:[#allocation14 + $0x510] sm:$0xff]
    %v1057 = vld [vmem:[#allocation14 + $0x518] sm:$0xff]
    %v1058 = vld [vmem:[#allocation14 + $0x520] sm:$0xf]
    %v1059 = vld [vmem:[#allocation14 + $0x524] sm:$0xff]
    %v1060 = vld [vmem:[#allocation14 + $0x52c] sm:$0xff]
    %v1061 = vld [vmem:[#allocation14 + $0x534] sm:$0xff]
    %v1062 = vld [vmem:[#allocation14 + $0x53c] sm:$0xf]
    %v1063 = vld [vmem:[#allocation14 + $0x540] sm:$0xff]
    %v1064 = vld [vmem:[#allocation14 + $0x548] sm:$0xff]
    %v1065 = vld [vmem:[#allocation14 + $0x550] sm:$0xff]
    %v1066 = vld [vmem:[#allocation14 + $0x558] sm:$0xf]
    %v1067 = vld [vmem:[#allocation14 + $0x55c] sm:$0xff]
    %v1068 = vld [vmem:[#allocation14 + $0x564] sm:$0xff]
    %v1069 = vld [vmem:[#allocation14 + $0x56c] sm:$0xff]
    %v1070 = vld [vmem:[#allocation14 + $0x574] sm:$0xf]
    %v1071 = vld [vmem:[#allocation14 + $0x578] sm:$0xff]
    %v1072 = vld [vmem:[#allocation14 + $0x580] sm:$0xff]
    %v1073 = vld [vmem:[#allocation14 + $0x588] sm:$0xff]
    %v1074 = vld [vmem:[#allocation14 + $0x590] sm:$0xf]
    %v1075 = vld [vmem:[#allocation14 + $0x594] sm:$0xff]
    %v1076 = vld [vmem:[#allocation14 + $0x59c] sm:$0xff]
    %v1077 = vld [vmem:[#allocation14 + $0x5a4] sm:$0xff]
    %v1078 = vld [vmem:[#allocation14 + $0x5ac] sm:$0xf]
    %v1079 = vld [vmem:[#allocation14 + $0x5b0] sm:$0xff]
    %v1080 = vld [vmem:[#allocation14 + $0x5b8] sm:$0xff]
    %v1081 = vld [vmem:[#allocation14 + $0x5c0] sm:$0xff]
    %v1082 = vld [vmem:[#allocation14 + $0x5c8] sm:$0xf]
    %v1083 = vld [vmem:[#allocation14 + $0x5cc] sm:$0xff]
    %v1084 = vld [vmem:[#allocation14 + $0x5d4] sm:$0xff]
    %v1085 = vld [vmem:[#allocation14 + $0x5dc] sm:$0xff]
    %v1086 = vld [vmem:[#allocation14 + $0x5e4] sm:$0xf]
    %v1087 = vld [vmem:[#allocation14 + $0x5e8] sm:$0xff]
    %v1088 = vld [vmem:[#allocation14 + $0x5f0] sm:$0xff]
    %v1089 = vld [vmem:[#allocation14 + $0x5f8] sm:$0xff]
    %v1090 = vld [vmem:[#allocation14 + $0x600] sm:$0xf]
    %v1091 = vld [vmem:[#allocation14 + $0x604] sm:$0xff]
    %v1092 = vld [vmem:[#allocation14 + $0x60c] sm:$0xff]
    %v1093 = vld [vmem:[#allocation14 + $0x614] sm:$0xff]
    %v1094 = vld [vmem:[#allocation14 + $0x61c] sm:$0xf]
    %v1095 = vld [vmem:[#allocation14 + $0x620] sm:$0xff]
    %v1096 = vld [vmem:[#allocation14 + $0x628] sm:$0xff]
    %v1097 = vld [vmem:[#allocation14 + $0x630] sm:$0xff]
    %v1098 = vld [vmem:[#allocation14 + $0x638] sm:$0xf]
    %v1099 = vld [vmem:[#allocation14 + $0x63c] sm:$0xff]
    %v1100 = vld [vmem:[#allocation14 + $0x644] sm:$0xff]
    %v1101 = vld [vmem:[#allocation14 + $0x64c] sm:$0xff]
    %v1102 = vld [vmem:[#allocation14 + $0x654] sm:$0xf]
    %v1103 = vld [vmem:[#allocation14 + $0x658] sm:$0xff]
    %v1104 = vld [vmem:[#allocation14 + $0x660] sm:$0xff]
    %v1105 = vld [vmem:[#allocation14 + $0x668] sm:$0xff]
    %v1106 = vld [vmem:[#allocation14 + $0x670] sm:$0xf]
    %v1107 = vld [vmem:[#allocation14 + $0x674] sm:$0xff]
    %v1108 = vld [vmem:[#allocation14 + $0x67c] sm:$0xff]
    %v1109 = vld [vmem:[#allocation14 + $0x684] sm:$0xff]
    %v1110 = vld [vmem:[#allocation14 + $0x68c] sm:$0xf]
    %v1111 = vld [vmem:[#allocation14 + $0x690] sm:$0xff]
    %v1112 = vld [vmem:[#allocation14 + $0x698] sm:$0xff]
    %v1113 = vld [vmem:[#allocation14 + $0x6a0] sm:$0xff]
    %v1114 = vld [vmem:[#allocation14 + $0x6a8] sm:$0xf]
    %v1115 = vld [vmem:[#allocation14 + $0x6ac] sm:$0xff]
    %v1116 = vld [vmem:[#allocation14 + $0x6b4] sm:$0xff]
    %v1117 = vld [vmem:[#allocation14 + $0x6bc] sm:$0xff]
    %v1118 = vld [vmem:[#allocation14 + $0x6c4] sm:$0xf]
    %v1119 = vld [vmem:[#allocation14 + $0x6c8] sm:$0xff]
    %v1120 = vld [vmem:[#allocation14 + $0x6d0] sm:$0xff]
    %v1121 = vld [vmem:[#allocation14 + $0x6d8] sm:$0xff]
    %v1122 = vld [vmem:[#allocation14 + $0x6e0] sm:$0xf]
    %v1123 = vld [vmem:[#allocation14 + $0x6e4] sm:$0xff]
    %v1124 = vld [vmem:[#allocation14 + $0x6ec] sm:$0xff]
    %v1125 = vld [vmem:[#allocation14 + $0x6f4] sm:$0xff]
    %v1126 = vld [vmem:[#allocation14 + $0x6fc] sm:$0xf]
    %v1127 = vld [vmem:[%s8] sm:$0xff]
    %v1129 = vlaneseq
    %v1130 = vshrl.u32 %v1129, 7
    %v1131 = vsub.s32 0, %v1130
    %v1132 = vrot.slane %v1127, %v1131
    %v1133 = vlaneseq
    %v1134 = vshrl.u32 %v1133, 7
    %v1135 = vsub.s32 1, %v1134
    %v1136 = vrot.slane %v1127, %v1135
    %v1137 = vlaneseq
    %v1138 = vshrl.u32 %v1137, 7
    %v1139 = vsub.s32 2, %v1138
    %v1140 = vrot.slane %v1127, %v1139
    %v1141 = vlaneseq
    %v1142 = vshrl.u32 %v1141, 7
    %v1143 = vsub.s32 3, %v1142
    %v1144 = vrot.slane %v1127, %v1143
    %v1145 = vlaneseq
    %v1146 = vshrl.u32 %v1145, 7
    %v1147 = vsub.s32 4, %v1146
    %v1148 = vrot.slane %v1127, %v1147
    %v1149 = vlaneseq
    %v1150 = vshrl.u32 %v1149, 7
    %v1151 = vsub.s32 5, %v1150
    %v1152 = vrot.slane %v1127, %v1151
    %v1153 = vlaneseq
    %v1154 = vshrl.u32 %v1153, 7
    %v1155 = vsub.s32 6, %v1154
    %v1156 = vrot.slane %v1127, %v1155
    %v1420 = vunpack.c.l.b16 %v871
    %v1421 = vunpack.c.h.b16 %v871
    %v1422 = vunpack.c.l.b16 %v872
    %v1423 = vunpack.c.h.b16 %v872
    %v1424 = vunpack.c.l.b16 %v873
    %v1425 = vunpack.c.h.b16 %v873
    %v1426 = vunpack.c.l.b16 %v874
    %v1427 = vunpack.c.l.b16 %v875
    %v1428 = vunpack.c.h.b16 %v875
    %v1429 = vunpack.c.l.b16 %v876
    %v1430 = vunpack.c.h.b16 %v876
    %v1431 = vunpack.c.l.b16 %v877
    %v1432 = vunpack.c.h.b16 %v877
    %v1433 = vunpack.c.l.b16 %v878
    %v1434 = vunpack.c.l.b16 %v879
    %v1435 = vunpack.c.h.b16 %v879
    %v1436 = vunpack.c.l.b16 %v880
    %v1437 = vunpack.c.h.b16 %v880
    %v1438 = vunpack.c.l.b16 %v881
    %v1439 = vunpack.c.h.b16 %v881
    %v1440 = vunpack.c.l.b16 %v882
    %v1441 = vunpack.c.l.b16 %v883
    %v1442 = vunpack.c.h.b16 %v883
    %v1443 = vunpack.c.l.b16 %v884
    %v1444 = vunpack.c.h.b16 %v884
    %v1445 = vunpack.c.l.b16 %v885
    %v1446 = vunpack.c.h.b16 %v885
    %v1447 = vunpack.c.l.b16 %v886
    %v1448 = vunpack.c.l.b16 %v887
    %v1449 = vunpack.c.h.b16 %v887
    %v1450 = vunpack.c.l.b16 %v888
    %v1451 = vunpack.c.h.b16 %v888
    %v1452 = vunpack.c.l.b16 %v889
    %v1453 = vunpack.c.h.b16 %v889
    %v1454 = vunpack.c.l.b16 %v890
    %v1455 = vunpack.c.l.b16 %v891
    %v1456 = vunpack.c.h.b16 %v891
    %v1457 = vunpack.c.l.b16 %v892
    %v1458 = vunpack.c.h.b16 %v892
    %v1459 = vunpack.c.l.b16 %v893
    %v1460 = vunpack.c.h.b16 %v893
    %v1461 = vunpack.c.l.b16 %v894
    %v1462 = vunpack.c.l.b16 %v895
    %v1463 = vunpack.c.h.b16 %v895
    %v1464 = vunpack.c.l.b16 %v896
    %v1465 = vunpack.c.h.b16 %v896
    %v1466 = vunpack.c.l.b16 %v897
    %v1467 = vunpack.c.h.b16 %v897
    %v1468 = vunpack.c.l.b16 %v898
    %v1469 = vunpack.c.l.b16 %v899
    %v1470 = vunpack.c.h.b16 %v899
    %v1471 = vunpack.c.l.b16 %v900
    %v1472 = vunpack.c.h.b16 %v900
    %v1473 = vunpack.c.l.b16 %v901
    %v1474 = vunpack.c.h.b16 %v901
    %v1475 = vunpack.c.l.b16 %v902
    %v1476 = vunpack.c.l.b16 %v903
    %v1477 = vunpack.c.h.b16 %v903
    %v1478 = vunpack.c.l.b16 %v904
    %v1479 = vunpack.c.h.b16 %v904
    %v1480 = vunpack.c.l.b16 %v905
    %v1481 = vunpack.c.h.b16 %v905
    %v1482 = vunpack.c.l.b16 %v906
    %v1483 = vunpack.c.l.b16 %v907
    %v1484 = vunpack.c.h.b16 %v907
    %v1485 = vunpack.c.l.b16 %v908
    %v1486 = vunpack.c.h.b16 %v908
    %v1487 = vunpack.c.l.b16 %v909
    %v1488 = vunpack.c.h.b16 %v909
    %v1489 = vunpack.c.l.b16 %v910
    %v1490 = vunpack.c.l.b16 %v911
    %v1491 = vunpack.c.h.b16 %v911
    %v1492 = vunpack.c.l.b16 %v912
    %v1493 = vunpack.c.h.b16 %v912
    %v1494 = vunpack.c.l.b16 %v913
    %v1495 = vunpack.c.h.b16 %v913
    %v1496 = vunpack.c.l.b16 %v914
    %v1497 = vunpack.c.l.b16 %v915
    %v1498 = vunpack.c.h.b16 %v915
    %v1499 = vunpack.c.l.b16 %v916
    %v1500 = vunpack.c.h.b16 %v916
    %v1501 = vunpack.c.l.b16 %v917
    %v1502 = vunpack.c.h.b16 %v917
    %v1503 = vunpack.c.l.b16 %v918
    %v1504 = vunpack.c.l.b16 %v919
    %v1505 = vunpack.c.h.b16 %v919
    %v1506 = vunpack.c.l.b16 %v920
    %v1507 = vunpack.c.h.b16 %v920
    %v1508 = vunpack.c.l.b16 %v921
    %v1509 = vunpack.c.h.b16 %v921
    %v1510 = vunpack.c.l.b16 %v922
    %v1511 = vunpack.c.l.b16 %v923
    %v1512 = vunpack.c.h.b16 %v923
    %v1513 = vunpack.c.l.b16 %v924
    %v1514 = vunpack.c.h.b16 %v924
    %v1515 = vunpack.c.l.b16 %v925
    %v1516 = vunpack.c.h.b16 %v925
    %v1517 = vunpack.c.l.b16 %v926
    %v1518 = vunpack.c.l.b16 %v927
    %v1519 = vunpack.c.h.b16 %v927
    %v1520 = vunpack.c.l.b16 %v928
    %v1521 = vunpack.c.h.b16 %v928
    %v1522 = vunpack.c.l.b16 %v929
    %v1523 = vunpack.c.h.b16 %v929
    %v1524 = vunpack.c.l.b16 %v930
    %v1525 = vunpack.c.l.b16 %v931
    %v1526 = vunpack.c.h.b16 %v931
    %v1527 = vunpack.c.l.b16 %v932
    %v1528 = vunpack.c.h.b16 %v932
    %v1529 = vunpack.c.l.b16 %v933
    %v1530 = vunpack.c.h.b16 %v933
    %v1531 = vunpack.c.l.b16 %v934
    %v1532 = vunpack.c.l.b16 %v935
    %v1533 = vunpack.c.h.b16 %v935
    %v1534 = vunpack.c.l.b16 %v936
    %v1535 = vunpack.c.h.b16 %v936
    %v1536 = vunpack.c.l.b16 %v937
    %v1537 = vunpack.c.h.b16 %v937
    %v1538 = vunpack.c.l.b16 %v938
    %v1539 = vunpack.c.l.b16 %v939
    %v1540 = vunpack.c.h.b16 %v939
    %v1541 = vunpack.c.l.b16 %v940
    %v1542 = vunpack.c.h.b16 %v940
    %v1543 = vunpack.c.l.b16 %v941
    %v1544 = vunpack.c.h.b16 %v941
    %v1545 = vunpack.c.l.b16 %v942
    %v1546 = vunpack.c.l.b16 %v943
    %v1547 = vunpack.c.h.b16 %v943
    %v1548 = vunpack.c.l.b16 %v944
    %v1549 = vunpack.c.h.b16 %v944
    %v1550 = vunpack.c.l.b16 %v945
    %v1551 = vunpack.c.h.b16 %v945
    %v1552 = vunpack.c.l.b16 %v946
    %v1553 = vunpack.c.l.b16 %v947
    %v1554 = vunpack.c.h.b16 %v947
    %v1555 = vunpack.c.l.b16 %v948
    %v1556 = vunpack.c.h.b16 %v948
    %v1557 = vunpack.c.l.b16 %v949
    %v1558 = vunpack.c.h.b16 %v949
    %v1559 = vunpack.c.l.b16 %v950
    %v1560 = vunpack.c.l.b16 %v951
    %v1561 = vunpack.c.h.b16 %v951
    %v1562 = vunpack.c.l.b16 %v952
    %v1563 = vunpack.c.h.b16 %v952
    %v1564 = vunpack.c.l.b16 %v953
    %v1565 = vunpack.c.h.b16 %v953
    %v1566 = vunpack.c.l.b16 %v954
    %v1567 = vunpack.c.l.b16 %v955
    %v1568 = vunpack.c.h.b16 %v955
    %v1569 = vunpack.c.l.b16 %v956
    %v1570 = vunpack.c.h.b16 %v956
    %v1571 = vunpack.c.l.b16 %v957
    %v1572 = vunpack.c.h.b16 %v957
    %v1573 = vunpack.c.l.b16 %v958
    %v1574 = vunpack.c.l.b16 %v959
    %v1575 = vunpack.c.h.b16 %v959
    %v1576 = vunpack.c.l.b16 %v960
    %v1577 = vunpack.c.h.b16 %v960
    %v1578 = vunpack.c.l.b16 %v961
    %v1579 = vunpack.c.h.b16 %v961
    %v1580 = vunpack.c.l.b16 %v962
    %v1581 = vunpack.c.l.b16 %v963
    %v1582 = vunpack.c.h.b16 %v963
    %v1583 = vunpack.c.l.b16 %v964
    %v1584 = vunpack.c.h.b16 %v964
    %v1585 = vunpack.c.l.b16 %v965
    %v1586 = vunpack.c.h.b16 %v965
    %v1587 = vunpack.c.l.b16 %v966
    %v1588 = vunpack.c.l.b16 %v967
    %v1589 = vunpack.c.h.b16 %v967
    %v1590 = vunpack.c.l.b16 %v968
    %v1591 = vunpack.c.h.b16 %v968
    %v1592 = vunpack.c.l.b16 %v969
    %v1593 = vunpack.c.h.b16 %v969
    %v1594 = vunpack.c.l.b16 %v970
    %v1595 = vunpack.c.l.b16 %v971
    %v1596 = vunpack.c.h.b16 %v971
    %v1597 = vunpack.c.l.b16 %v972
    %v1598 = vunpack.c.h.b16 %v972
    %v1599 = vunpack.c.l.b16 %v973
    %v1600 = vunpack.c.h.b16 %v973
    %v1601 = vunpack.c.l.b16 %v974
    %v1602 = vunpack.c.l.b16 %v975
    %v1603 = vunpack.c.h.b16 %v975
    %v1604 = vunpack.c.l.b16 %v976
    %v1605 = vunpack.c.h.b16 %v976
    %v1606 = vunpack.c.l.b16 %v977
    %v1607 = vunpack.c.h.b16 %v977
    %v1608 = vunpack.c.l.b16 %v978
    %v1609 = vunpack.c.l.b16 %v979
    %v1610 = vunpack.c.h.b16 %v979
    %v1611 = vunpack.c.l.b16 %v980
    %v1612 = vunpack.c.h.b16 %v980
    %v1613 = vunpack.c.l.b16 %v981
    %v1614 = vunpack.c.h.b16 %v981
    %v1615 = vunpack.c.l.b16 %v982
    %v1616 = vunpack.c.l.b16 %v983
    %v1617 = vunpack.c.h.b16 %v983
    %v1618 = vunpack.c.l.b16 %v984
    %v1619 = vunpack.c.h.b16 %v984
    %v1620 = vunpack.c.l.b16 %v985
    %v1621 = vunpack.c.h.b16 %v985
    %v1622 = vunpack.c.l.b16 %v986
    %v1623 = vunpack.c.l.b16 %v987
    %v1624 = vunpack.c.h.b16 %v987
    %v1625 = vunpack.c.l.b16 %v988
    %v1626 = vunpack.c.h.b16 %v988
    %v1627 = vunpack.c.l.b16 %v989
    %v1628 = vunpack.c.h.b16 %v989
    %v1629 = vunpack.c.l.b16 %v990
    %v1630 = vunpack.c.l.b16 %v991
    %v1631 = vunpack.c.h.b16 %v991
    %v1632 = vunpack.c.l.b16 %v992
    %v1633 = vunpack.c.h.b16 %v992
    %v1634 = vunpack.c.l.b16 %v993
    %v1635 = vunpack.c.h.b16 %v993
    %v1636 = vunpack.c.l.b16 %v994
    %v1637 = vunpack.c.l.b16 %v995
    %v1638 = vunpack.c.h.b16 %v995
    %v1639 = vunpack.c.l.b16 %v996
    %v1640 = vunpack.c.h.b16 %v996
    %v1641 = vunpack.c.l.b16 %v997
    %v1642 = vunpack.c.h.b16 %v997
    %v1643 = vunpack.c.l.b16 %v998
    %v1644 = vunpack.c.l.b16 %v999
    %v1645 = vunpack.c.h.b16 %v999
    %v1646 = vunpack.c.l.b16 %v1000
    %v1647 = vunpack.c.h.b16 %v1000
    %v1648 = vunpack.c.l.b16 %v1001
    %v1649 = vunpack.c.h.b16 %v1001
    %v1650 = vunpack.c.l.b16 %v1002
    %v1651 = vunpack.c.l.b16 %v1003
    %v1652 = vunpack.c.h.b16 %v1003
    %v1653 = vunpack.c.l.b16 %v1004
    %v1654 = vunpack.c.h.b16 %v1004
    %v1655 = vunpack.c.l.b16 %v1005
    %v1656 = vunpack.c.h.b16 %v1005
    %v1657 = vunpack.c.l.b16 %v1006
    %v1658 = vunpack.c.l.b16 %v1007
    %v1659 = vunpack.c.h.b16 %v1007
    %v1660 = vunpack.c.l.b16 %v1008
    %v1661 = vunpack.c.h.b16 %v1008
    %v1662 = vunpack.c.l.b16 %v1009
    %v1663 = vunpack.c.h.b16 %v1009
    %v1664 = vunpack.c.l.b16 %v1010
    %v1665 = vunpack.c.l.b16 %v1011
    %v1666 = vunpack.c.h.b16 %v1011
    %v1667 = vunpack.c.l.b16 %v1012
    %v1668 = vunpack.c.h.b16 %v1012
    %v1669 = vunpack.c.l.b16 %v1013
    %v1670 = vunpack.c.h.b16 %v1013
    %v1671 = vunpack.c.l.b16 %v1014
    %v1672 = vunpack.c.l.b16 %v1015
    %v1673 = vunpack.c.h.b16 %v1015
    %v1674 = vunpack.c.l.b16 %v1016
    %v1675 = vunpack.c.h.b16 %v1016
    %v1676 = vunpack.c.l.b16 %v1017
    %v1677 = vunpack.c.h.b16 %v1017
    %v1678 = vunpack.c.l.b16 %v1018
    %v1679 = vunpack.c.l.b16 %v1019
    %v1680 = vunpack.c.h.b16 %v1019
    %v1681 = vunpack.c.l.b16 %v1020
    %v1682 = vunpack.c.h.b16 %v1020
    %v1683 = vunpack.c.l.b16 %v1021
    %v1684 = vunpack.c.h.b16 %v1021
    %v1685 = vunpack.c.l.b16 %v1022
    %v1686 = vunpack.c.l.b16 %v1023
    %v1687 = vunpack.c.h.b16 %v1023
    %v1688 = vunpack.c.l.b16 %v1024
    %v1689 = vunpack.c.h.b16 %v1024
    %v1690 = vunpack.c.l.b16 %v1025
    %v1691 = vunpack.c.h.b16 %v1025
    %v1692 = vunpack.c.l.b16 %v1026
    %v1693 = vunpack.c.l.b16 %v1027
    %v1694 = vunpack.c.h.b16 %v1027
    %v1695 = vunpack.c.l.b16 %v1028
    %v1696 = vunpack.c.h.b16 %v1028
    %v1697 = vunpack.c.l.b16 %v1029
    %v1698 = vunpack.c.h.b16 %v1029
    %v1699 = vunpack.c.l.b16 %v1030
    %v1700 = vunpack.c.l.b16 %v1031
    %v1701 = vunpack.c.h.b16 %v1031
    %v1702 = vunpack.c.l.b16 %v1032
    %v1703 = vunpack.c.h.b16 %v1032
    %v1704 = vunpack.c.l.b16 %v1033
    %v1705 = vunpack.c.h.b16 %v1033
    %v1706 = vunpack.c.l.b16 %v1034
    %v1707 = vunpack.c.l.b16 %v1035
    %v1708 = vunpack.c.h.b16 %v1035
    %v1709 = vunpack.c.l.b16 %v1036
    %v1710 = vunpack.c.h.b16 %v1036
    %v1711 = vunpack.c.l.b16 %v1037
    %v1712 = vunpack.c.h.b16 %v1037
    %v1713 = vunpack.c.l.b16 %v1038
    %v1714 = vunpack.c.l.b16 %v1039
    %v1715 = vunpack.c.h.b16 %v1039
    %v1716 = vunpack.c.l.b16 %v1040
    %v1717 = vunpack.c.h.b16 %v1040
    %v1718 = vunpack.c.l.b16 %v1041
    %v1719 = vunpack.c.h.b16 %v1041
    %v1720 = vunpack.c.l.b16 %v1042
    %v1721 = vunpack.c.l.b16 %v1043
    %v1722 = vunpack.c.h.b16 %v1043
    %v1723 = vunpack.c.l.b16 %v1044
    %v1724 = vunpack.c.h.b16 %v1044
    %v1725 = vunpack.c.l.b16 %v1045
    %v1726 = vunpack.c.h.b16 %v1045
    %v1727 = vunpack.c.l.b16 %v1046
    %v1728 = vunpack.c.l.b16 %v1047
    %v1729 = vunpack.c.h.b16 %v1047
    %v1730 = vunpack.c.l.b16 %v1048
    %v1731 = vunpack.c.h.b16 %v1048
    %v1732 = vunpack.c.l.b16 %v1049
    %v1733 = vunpack.c.h.b16 %v1049
    %v1734 = vunpack.c.l.b16 %v1050
    %v1735 = vunpack.c.l.b16 %v1051
    %v1736 = vunpack.c.h.b16 %v1051
    %v1737 = vunpack.c.l.b16 %v1052
    %v1738 = vunpack.c.h.b16 %v1052
    %v1739 = vunpack.c.l.b16 %v1053
    %v1740 = vunpack.c.h.b16 %v1053
    %v1741 = vunpack.c.l.b16 %v1054
    %v1742 = vunpack.c.l.b16 %v1055
    %v1743 = vunpack.c.h.b16 %v1055
    %v1744 = vunpack.c.l.b16 %v1056
    %v1745 = vunpack.c.h.b16 %v1056
    %v1746 = vunpack.c.l.b16 %v1057
    %v1747 = vunpack.c.h.b16 %v1057
    %v1748 = vunpack.c.l.b16 %v1058
    %v1749 = vunpack.c.l.b16 %v1059
    %v1750 = vunpack.c.h.b16 %v1059
    %v1751 = vunpack.c.l.b16 %v1060
    %v1752 = vunpack.c.h.b16 %v1060
    %v1753 = vunpack.c.l.b16 %v1061
    %v1754 = vunpack.c.h.b16 %v1061
    %v1755 = vunpack.c.l.b16 %v1062
    %v1756 = vunpack.c.l.b16 %v1063
    %v1757 = vunpack.c.h.b16 %v1063
    %v1758 = vunpack.c.l.b16 %v1064
    %v1759 = vunpack.c.h.b16 %v1064
    %v1760 = vunpack.c.l.b16 %v1065
    %v1761 = vunpack.c.h.b16 %v1065
    %v1762 = vunpack.c.l.b16 %v1066
    %v1763 = vunpack.c.l.b16 %v1067
    %v1764 = vunpack.c.h.b16 %v1067
    %v1765 = vunpack.c.l.b16 %v1068
    %v1766 = vunpack.c.h.b16 %v1068
    %v1767 = vunpack.c.l.b16 %v1069
    %v1768 = vunpack.c.h.b16 %v1069
    %v1769 = vunpack.c.l.b16 %v1070
    %v1770 = vunpack.c.l.b16 %v1071
    %v1771 = vunpack.c.h.b16 %v1071
    %v1772 = vunpack.c.l.b16 %v1072
    %v1773 = vunpack.c.h.b16 %v1072
    %v1774 = vunpack.c.l.b16 %v1073
    %v1775 = vunpack.c.h.b16 %v1073
    %v1776 = vunpack.c.l.b16 %v1074
    %v1777 = vunpack.c.l.b16 %v1075
    %v1778 = vunpack.c.h.b16 %v1075
    %v1779 = vunpack.c.l.b16 %v1076
    %v1780 = vunpack.c.h.b16 %v1076
    %v1781 = vunpack.c.l.b16 %v1077
    %v1782 = vunpack.c.h.b16 %v1077
    %v1783 = vunpack.c.l.b16 %v1078
    %v1784 = vunpack.c.l.b16 %v1079
    %v1785 = vunpack.c.h.b16 %v1079
    %v1786 = vunpack.c.l.b16 %v1080
    %v1787 = vunpack.c.h.b16 %v1080
    %v1788 = vunpack.c.l.b16 %v1081
    %v1789 = vunpack.c.h.b16 %v1081
    %v1790 = vunpack.c.l.b16 %v1082
    %v1791 = vunpack.c.l.b16 %v1083
    %v1792 = vunpack.c.h.b16 %v1083
    %v1793 = vunpack.c.l.b16 %v1084
    %v1794 = vunpack.c.h.b16 %v1084
    %v1795 = vunpack.c.l.b16 %v1085
    %v1796 = vunpack.c.h.b16 %v1085
    %v1797 = vunpack.c.l.b16 %v1086
    %v1798 = vunpack.c.l.b16 %v1087
    %v1799 = vunpack.c.h.b16 %v1087
    %v1800 = vunpack.c.l.b16 %v1088
    %v1801 = vunpack.c.h.b16 %v1088
    %v1802 = vunpack.c.l.b16 %v1089
    %v1803 = vunpack.c.h.b16 %v1089
    %v1804 = vunpack.c.l.b16 %v1090
    %v1805 = vunpack.c.l.b16 %v1091
    %v1806 = vunpack.c.h.b16 %v1091
    %v1807 = vunpack.c.l.b16 %v1092
    %v1808 = vunpack.c.h.b16 %v1092
    %v1809 = vunpack.c.l.b16 %v1093
    %v1810 = vunpack.c.h.b16 %v1093
    %v1811 = vunpack.c.l.b16 %v1094
    %v1812 = vunpack.c.l.b16 %v1095
    %v1813 = vunpack.c.h.b16 %v1095
    %v1814 = vunpack.c.l.b16 %v1096
    %v1815 = vunpack.c.h.b16 %v1096
    %v1816 = vunpack.c.l.b16 %v1097
    %v1817 = vunpack.c.h.b16 %v1097
    %v1818 = vunpack.c.l.b16 %v1098
    %v1819 = vunpack.c.l.b16 %v1099
    %v1820 = vunpack.c.h.b16 %v1099
    %v1821 = vunpack.c.l.b16 %v1100
    %v1822 = vunpack.c.h.b16 %v1100
    %v1823 = vunpack.c.l.b16 %v1101
    %v1824 = vunpack.c.h.b16 %v1101
    %v1825 = vunpack.c.l.b16 %v1102
    %v1826 = vunpack.c.l.b16 %v1103
    %v1827 = vunpack.c.h.b16 %v1103
    %v1828 = vunpack.c.l.b16 %v1104
    %v1829 = vunpack.c.h.b16 %v1104
    %v1830 = vunpack.c.l.b16 %v1105
    %v1831 = vunpack.c.h.b16 %v1105
    %v1832 = vunpack.c.l.b16 %v1106
    %v1833 = vunpack.c.l.b16 %v1107
    %v1834 = vunpack.c.h.b16 %v1107
    %v1835 = vunpack.c.l.b16 %v1108
    %v1836 = vunpack.c.h.b16 %v1108
    %v1837 = vunpack.c.l.b16 %v1109
    %v1838 = vunpack.c.h.b16 %v1109
    %v1839 = vunpack.c.l.b16 %v1110
    %v1840 = vunpack.c.l.b16 %v1111
    %v1841 = vunpack.c.h.b16 %v1111
    %v1842 = vunpack.c.l.b16 %v1112
    %v1843 = vunpack.c.h.b16 %v1112
    %v1844 = vunpack.c.l.b16 %v1113
    %v1845 = vunpack.c.h.b16 %v1113
    %v1846 = vunpack.c.l.b16 %v1114
    %v1847 = vunpack.c.l.b16 %v1115
    %v1848 = vunpack.c.h.b16 %v1115
    %v1849 = vunpack.c.l.b16 %v1116
    %v1850 = vunpack.c.h.b16 %v1116
    %v1851 = vunpack.c.l.b16 %v1117
    %v1852 = vunpack.c.h.b16 %v1117
    %v1853 = vunpack.c.l.b16 %v1118
    %v1854 = vunpack.c.l.b16 %v1119
    %v1855 = vunpack.c.h.b16 %v1119
    %v1856 = vunpack.c.l.b16 %v1120
    %v1857 = vunpack.c.h.b16 %v1120
    %v1858 = vunpack.c.l.b16 %v1121
    %v1859 = vunpack.c.h.b16 %v1121
    %v1860 = vunpack.c.l.b16 %v1122
    %v1861 = vunpack.c.l.b16 %v1123
    %v1862 = vunpack.c.h.b16 %v1123
    %v1863 = vunpack.c.l.b16 %v1124
    %v1864 = vunpack.c.h.b16 %v1124
    %v1865 = vunpack.c.l.b16 %v1125
    %v1866 = vunpack.c.h.b16 %v1125
    %v1867 = vunpack.c.l.b16 %v1126
    %v1868 = vpack.c.b16 %v1427, %v1420
    %v1869 = vpack.c.b16 %v1428, %v1421
    %v1870 = vpack.c.b16 %v1429, %v1422
    %v1871 = vpack.c.b16 %v1430, %v1423
    %v1872 = vpack.c.b16 %v1431, %v1424
    %v1873 = vpack.c.b16 %v1432, %v1425
    %v1874 = vpack.c.b16 %v1433, %v1426
    %v1875 = vpack.c.b16 %v1441, %v1434
    %v1876 = vpack.c.b16 %v1442, %v1435
    %v1877 = vpack.c.b16 %v1443, %v1436
    %v1878 = vpack.c.b16 %v1444, %v1437
    %v1879 = vpack.c.b16 %v1445, %v1438
    %v1880 = vpack.c.b16 %v1446, %v1439
    %v1881 = vpack.c.b16 %v1447, %v1440
    %v1882 = vpack.c.b16 %v1455, %v1448
    %v1883 = vpack.c.b16 %v1456, %v1449
    %v1884 = vpack.c.b16 %v1457, %v1450
    %v1885 = vpack.c.b16 %v1458, %v1451
    %v1886 = vpack.c.b16 %v1459, %v1452
    %v1887 = vpack.c.b16 %v1460, %v1453
    %v1888 = vpack.c.b16 %v1461, %v1454
    %v1889 = vpack.c.b16 %v1469, %v1462
    %v1890 = vpack.c.b16 %v1470, %v1463
    %v1891 = vpack.c.b16 %v1471, %v1464
    %v1892 = vpack.c.b16 %v1472, %v1465
    %v1893 = vpack.c.b16 %v1473, %v1466
    %v1894 = vpack.c.b16 %v1474, %v1467
    %v1895 = vpack.c.b16 %v1475, %v1468
    %v1896 = vpack.c.b16 %v1483, %v1476
    %v1897 = vpack.c.b16 %v1484, %v1477
    %v1898 = vpack.c.b16 %v1485, %v1478
    %v1899 = vpack.c.b16 %v1486, %v1479
    %v1900 = vpack.c.b16 %v1487, %v1480
    %v1901 = vpack.c.b16 %v1488, %v1481
    %v1902 = vpack.c.b16 %v1489, %v1482
    %v1903 = vpack.c.b16 %v1497, %v1490
    %v1904 = vpack.c.b16 %v1498, %v1491
    %v1905 = vpack.c.b16 %v1499, %v1492
    %v1906 = vpack.c.b16 %v1500, %v1493
    %v1907 = vpack.c.b16 %v1501, %v1494
    %v1908 = vpack.c.b16 %v1502, %v1495
    %v1909 = vpack.c.b16 %v1503, %v1496
    %v1910 = vpack.c.b16 %v1511, %v1504
    %v1911 = vpack.c.b16 %v1512, %v1505
    %v1912 = vpack.c.b16 %v1513, %v1506
    %v1913 = vpack.c.b16 %v1514, %v1507
    %v1914 = vpack.c.b16 %v1515, %v1508
    %v1915 = vpack.c.b16 %v1516, %v1509
    %v1916 = vpack.c.b16 %v1517, %v1510
    %v1917 = vpack.c.b16 %v1525, %v1518
    %v1918 = vpack.c.b16 %v1526, %v1519
    %v1919 = vpack.c.b16 %v1527, %v1520
    %v1920 = vpack.c.b16 %v1528, %v1521
    %v1921 = vpack.c.b16 %v1529, %v1522
    %v1922 = vpack.c.b16 %v1530, %v1523
    %v1923 = vpack.c.b16 %v1531, %v1524
    %v1924 = vpack.c.b16 %v1539, %v1532
    %v1925 = vpack.c.b16 %v1540, %v1533
    %v1926 = vpack.c.b16 %v1541, %v1534
    %v1927 = vpack.c.b16 %v1542, %v1535
    %v1928 = vpack.c.b16 %v1543, %v1536
    %v1929 = vpack.c.b16 %v1544, %v1537
    %v1930 = vpack.c.b16 %v1545, %v1538
    %v1931 = vpack.c.b16 %v1553, %v1546
    %v1932 = vpack.c.b16 %v1554, %v1547
    %v1933 = vpack.c.b16 %v1555, %v1548
    %v1934 = vpack.c.b16 %v1556, %v1549
    %v1935 = vpack.c.b16 %v1557, %v1550
    %v1936 = vpack.c.b16 %v1558, %v1551
    %v1937 = vpack.c.b16 %v1559, %v1552
    %v1938 = vpack.c.b16 %v1567, %v1560
    %v1939 = vpack.c.b16 %v1568, %v1561
    %v1940 = vpack.c.b16 %v1569, %v1562
    %v1941 = vpack.c.b16 %v1570, %v1563
    %v1942 = vpack.c.b16 %v1571, %v1564
    %v1943 = vpack.c.b16 %v1572, %v1565
    %v1944 = vpack.c.b16 %v1573, %v1566
    %v1945 = vpack.c.b16 %v1581, %v1574
    %v1946 = vpack.c.b16 %v1582, %v1575
    %v1947 = vpack.c.b16 %v1583, %v1576
    %v1948 = vpack.c.b16 %v1584, %v1577
    %v1949 = vpack.c.b16 %v1585, %v1578
    %v1950 = vpack.c.b16 %v1586, %v1579
    %v1951 = vpack.c.b16 %v1587, %v1580
    %v1952 = vpack.c.b16 %v1595, %v1588
    %v1953 = vpack.c.b16 %v1596, %v1589
    %v1954 = vpack.c.b16 %v1597, %v1590
    %v1955 = vpack.c.b16 %v1598, %v1591
    %v1956 = vpack.c.b16 %v1599, %v1592
    %v1957 = vpack.c.b16 %v1600, %v1593
    %v1958 = vpack.c.b16 %v1601, %v1594
    %v1959 = vpack.c.b16 %v1609, %v1602
    %v1960 = vpack.c.b16 %v1610, %v1603
    %v1961 = vpack.c.b16 %v1611, %v1604
    %v1962 = vpack.c.b16 %v1612, %v1605
    %v1963 = vpack.c.b16 %v1613, %v1606
    %v1964 = vpack.c.b16 %v1614, %v1607
    %v1965 = vpack.c.b16 %v1615, %v1608
    %v1966 = vpack.c.b16 %v1623, %v1616
    %v1967 = vpack.c.b16 %v1624, %v1617
    %v1968 = vpack.c.b16 %v1625, %v1618
    %v1969 = vpack.c.b16 %v1626, %v1619
    %v1970 = vpack.c.b16 %v1627, %v1620
    %v1971 = vpack.c.b16 %v1628, %v1621
    %v1972 = vpack.c.b16 %v1629, %v1622
    %v1973 = vpack.c.b16 %v1637, %v1630
    %v1974 = vpack.c.b16 %v1638, %v1631
    %v1975 = vpack.c.b16 %v1639, %v1632
    %v1976 = vpack.c.b16 %v1640, %v1633
    %v1977 = vpack.c.b16 %v1641, %v1634
    %v1978 = vpack.c.b16 %v1642, %v1635
    %v1979 = vpack.c.b16 %v1643, %v1636
    %v1980 = vpack.c.b16 %v1651, %v1644
    %v1981 = vpack.c.b16 %v1652, %v1645
    %v1982 = vpack.c.b16 %v1653, %v1646
    %v1983 = vpack.c.b16 %v1654, %v1647
    %v1984 = vpack.c.b16 %v1655, %v1648
    %v1985 = vpack.c.b16 %v1656, %v1649
    %v1986 = vpack.c.b16 %v1657, %v1650
    %v1987 = vpack.c.b16 %v1665, %v1658
    %v1988 = vpack.c.b16 %v1666, %v1659
    %v1989 = vpack.c.b16 %v1667, %v1660
    %v1990 = vpack.c.b16 %v1668, %v1661
    %v1991 = vpack.c.b16 %v1669, %v1662
    %v1992 = vpack.c.b16 %v1670, %v1663
    %v1993 = vpack.c.b16 %v1671, %v1664
    %v1994 = vpack.c.b16 %v1679, %v1672
    %v1995 = vpack.c.b16 %v1680, %v1673
    %v1996 = vpack.c.b16 %v1681, %v1674
    %v1997 = vpack.c.b16 %v1682, %v1675
    %v1998 = vpack.c.b16 %v1683, %v1676
    %v1999 = vpack.c.b16 %v1684, %v1677
    %v2000 = vpack.c.b16 %v1685, %v1678
    %v2001 = vpack.c.b16 %v1693, %v1686
    %v2002 = vpack.c.b16 %v1694, %v1687
    %v2003 = vpack.c.b16 %v1695, %v1688
    %v2004 = vpack.c.b16 %v1696, %v1689
    %v2005 = vpack.c.b16 %v1697, %v1690
    %v2006 = vpack.c.b16 %v1698, %v1691
    %v2007 = vpack.c.b16 %v1699, %v1692
    %v2008 = vpack.c.b16 %v1707, %v1700
    %v2009 = vpack.c.b16 %v1708, %v1701
    %v2010 = vpack.c.b16 %v1709, %v1702
    %v2011 = vpack.c.b16 %v1710, %v1703
    %v2012 = vpack.c.b16 %v1711, %v1704
    %v2013 = vpack.c.b16 %v1712, %v1705
    %v2014 = vpack.c.b16 %v1713, %v1706
    %v2015 = vpack.c.b16 %v1721, %v1714
    %v2016 = vpack.c.b16 %v1722, %v1715
    %v2017 = vpack.c.b16 %v1723, %v1716
    %v2018 = vpack.c.b16 %v1724, %v1717
    %v2019 = vpack.c.b16 %v1725, %v1718
    %v2020 = vpack.c.b16 %v1726, %v1719
    %v2021 = vpack.c.b16 %v1727, %v1720
    %v2022 = vpack.c.b16 %v1735, %v1728
    %v2023 = vpack.c.b16 %v1736, %v1729
    %v2024 = vpack.c.b16 %v1737, %v1730
    %v2025 = vpack.c.b16 %v1738, %v1731
    %v2026 = vpack.c.b16 %v1739, %v1732
    %v2027 = vpack.c.b16 %v1740, %v1733
    %v2028 = vpack.c.b16 %v1741, %v1734
    %v2029 = vpack.c.b16 %v1749, %v1742
    %v2030 = vpack.c.b16 %v1750, %v1743
    %v2031 = vpack.c.b16 %v1751, %v1744
    %v2032 = vpack.c.b16 %v1752, %v1745
    %v2033 = vpack.c.b16 %v1753, %v1746
    %v2034 = vpack.c.b16 %v1754, %v1747
    %v2035 = vpack.c.b16 %v1755, %v1748
    %v2036 = vpack.c.b16 %v1763, %v1756
    %v2037 = vpack.c.b16 %v1764, %v1757
    %v2038 = vpack.c.b16 %v1765, %v1758
    %v2039 = vpack.c.b16 %v1766, %v1759
    %v2040 = vpack.c.b16 %v1767, %v1760
    %v2041 = vpack.c.b16 %v1768, %v1761
    %v2042 = vpack.c.b16 %v1769, %v1762
    %v2043 = vpack.c.b16 %v1777, %v1770
    %v2044 = vpack.c.b16 %v1778, %v1771
    %v2045 = vpack.c.b16 %v1779, %v1772
    %v2046 = vpack.c.b16 %v1780, %v1773
    %v2047 = vpack.c.b16 %v1781, %v1774
    %v2048 = vpack.c.b16 %v1782, %v1775
    %v2049 = vpack.c.b16 %v1783, %v1776
    %v2050 = vpack.c.b16 %v1791, %v1784
    %v2051 = vpack.c.b16 %v1792, %v1785
    %v2052 = vpack.c.b16 %v1793, %v1786
    %v2053 = vpack.c.b16 %v1794, %v1787
    %v2054 = vpack.c.b16 %v1795, %v1788
    %v2055 = vpack.c.b16 %v1796, %v1789
    %v2056 = vpack.c.b16 %v1797, %v1790
    %v2057 = vpack.c.b16 %v1805, %v1798
    %v2058 = vpack.c.b16 %v1806, %v1799
    %v2059 = vpack.c.b16 %v1807, %v1800
    %v2060 = vpack.c.b16 %v1808, %v1801
    %v2061 = vpack.c.b16 %v1809, %v1802
    %v2062 = vpack.c.b16 %v1810, %v1803
    %v2063 = vpack.c.b16 %v1811, %v1804
    %v2064 = vpack.c.b16 %v1819, %v1812
    %v2065 = vpack.c.b16 %v1820, %v1813
    %v2066 = vpack.c.b16 %v1821, %v1814
    %v2067 = vpack.c.b16 %v1822, %v1815
    %v2068 = vpack.c.b16 %v1823, %v1816
    %v2069 = vpack.c.b16 %v1824, %v1817
    %v2070 = vpack.c.b16 %v1825, %v1818
    %v2071 = vpack.c.b16 %v1833, %v1826
    %v2072 = vpack.c.b16 %v1834, %v1827
    %v2073 = vpack.c.b16 %v1835, %v1828
    %v2074 = vpack.c.b16 %v1836, %v1829
    %v2075 = vpack.c.b16 %v1837, %v1830
    %v2076 = vpack.c.b16 %v1838, %v1831
    %v2077 = vpack.c.b16 %v1839, %v1832
    %v2078 = vpack.c.b16 %v1847, %v1840
    %v2079 = vpack.c.b16 %v1848, %v1841
    %v2080 = vpack.c.b16 %v1849, %v1842
    %v2081 = vpack.c.b16 %v1850, %v1843
    %v2082 = vpack.c.b16 %v1851, %v1844
    %v2083 = vpack.c.b16 %v1852, %v1845
    %v2084 = vpack.c.b16 %v1853, %v1846
    %v2085 = vpack.c.b16 %v1861, %v1854
    %v2086 = vpack.c.b16 %v1862, %v1855
    %v2087 = vpack.c.b16 %v1863, %v1856
    %v2088 = vpack.c.b16 %v1864, %v1857
    %v2089 = vpack.c.b16 %v1865, %v1858
    %v2090 = vpack.c.b16 %v1866, %v1859
    %v2091 = vpack.c.b16 %v1867, %v1860
    %2316 = vmatprep.subr.bf16.mxu0 %v1918
    %2317 = vmatpush1.bf16.msra.mxu0 %v1917
    %2318 = vmatprep.subr.bf16.mxu0 %v1911
    %2319 = vmatpush1.bf16.msra.mxu0 %v1910
    %2320 = vmatprep.subr.bf16.mxu0 %v1904
    %2321 = vmatpush1.bf16.msra.mxu0 %v1903
    %2322 = vmatprep.subr.bf16.mxu0 %v1897
    %2323 = vmatpush1.bf16.msra.mxu0 %v1896
    %2324 = vmatprep.subr.bf16.mxu0 %v1890
    %2325 = vmatpush1.bf16.msra.mxu0 %v1889
    %2326 = vmatprep.subr.bf16.mxu0 %v1883
    %2327 = vmatpush1.bf16.msra.mxu0 %v1882
    %2328 = vmatprep.subr.bf16.mxu0 %v1876
    %2329 = vmatpush1.bf16.msra.mxu0 %v1875
    %2330 = vmatprep.subr.bf16.mxu0 %v1869
    %2331 = vmatpush1.bf16.msra.mxu0 %v1868
    %2332 = vmatprep.subr.bf16.mxu0 %v1974
    %2333 = vmatpush2.bf16.msra.mxu0 %v1973
    %2334 = vmatprep.subr.bf16.mxu0 %v1967
    %2335 = vmatpush2.bf16.msra.mxu0 %v1966
    %2336 = vmatprep.subr.bf16.mxu0 %v1960
    %2337 = vmatpush2.bf16.msra.mxu0 %v1959
    %2338 = vmatprep.subr.bf16.mxu0 %v1953
    %2339 = vmatpush2.bf16.msra.mxu0 %v1952
    %2340 = vmatprep.subr.bf16.mxu0 %v1946
    %2341 = vmatpush2.bf16.msra.mxu0 %v1945
    %2342 = vmatprep.subr.bf16.mxu0 %v1939
    %2343 = vmatpush2.bf16.msra.mxu0 %v1938
    %2344 = vmatprep.subr.bf16.mxu0 %v1932
    %2345 = vmatpush2.bf16.msra.mxu0 %v1931
    %2346 = vmatprep.subr.bf16.mxu0 %v1925
    %2347 = vmatpush2.bf16.msra.mxu0 %v1924
    %2348 = vmatprep.mubr.bf16.mxu0 %v868
    %2349 = vmatmul.mubr.bf16.gmra.mxu0 %v867
    %v2350 = vpop.f32.mrf.mxu0
    %v2351 = vadd.f32 %v1132, %v2350
    %v2352 = vpop.f32.mrf.mxu0
    %v2353 = vadd.f32 %v1136, %v2352
    %v2354 = vpop.f32.mrf.mxu0
    %v2355 = vpop.f32.mrf.mxu0
    %2356 = vdwg.mxu0
    %2357 = vmatprep.subr.bf16.mxu0 %v2030
    %2358 = vmatpush1.bf16.msra.mxu0 %v2029
    %2359 = vmatprep.subr.bf16.mxu0 %v2023
    %2360 = vmatpush1.bf16.msra.mxu0 %v2022
    %2361 = vmatprep.subr.bf16.mxu0 %v2016
    %2362 = vmatpush1.bf16.msra.mxu0 %v2015
    %2363 = vmatprep.subr.bf16.mxu0 %v2009
    %2364 = vmatpush1.bf16.msra.mxu0 %v2008
    %2365 = vmatprep.subr.bf16.mxu0 %v2002
    %2366 = vmatpush1.bf16.msra.mxu0 %v2001
    %2367 = vmatprep.subr.bf16.mxu0 %v1995
    %2368 = vmatpush1.bf16.msra.mxu0 %v1994
    %2369 = vmatprep.subr.bf16.mxu0 %v1988
    %2370 = vmatpush1.bf16.msra.mxu0 %v1987
    %2371 = vmatprep.subr.bf16.mxu0 %v1981
    %2372 = vmatpush1.bf16.msra.mxu0 %v1980
    %2373 = vmatprep.subr.bf16.mxu0 %v2086
    %2374 = vmatpush2.bf16.msra.mxu0 %v2085
    %2375 = vmatprep.subr.bf16.mxu0 %v2079
    %2376 = vmatpush2.bf16.msra.mxu0 %v2078
    %2377 = vmatprep.subr.bf16.mxu0 %v2072
    %2378 = vmatpush2.bf16.msra.mxu0 %v2071
    %2379 = vmatprep.subr.bf16.mxu0 %v2065
    %2380 = vmatpush2.bf16.msra.mxu0 %v2064
    %2381 = vmatprep.subr.bf16.mxu0 %v2058
    %2382 = vmatpush2.bf16.msra.mxu0 %v2057
    %2383 = vmatprep.subr.bf16.mxu0 %v2051
    %2384 = vmatpush2.bf16.msra.mxu0 %v2050
    %2385 = vmatprep.subr.bf16.mxu0 %v2044
    %2386 = vmatpush2.bf16.msra.mxu0 %v2043
    %2387 = vmatprep.subr.bf16.mxu0 %v2037
    %2388 = vmatpush2.bf16.msra.mxu0 %v2036
    %2389 = vmatprep.mubr.bf16.mxu0 %v870
    %2390 = vmatmul.mubr.bf16.gmra.mxu0 %v869
    %v2391 = vpop.f32.mrf.mxu0
    %v2392 = vadd.f32 %v2351, %v2391
    %v2393 = vpop.f32.mrf.mxu0
    %v2394 = vadd.f32 %v2353, %v2393
    %v2395 = vpop.f32.mrf.mxu0
    %v2396 = vpop.f32.mrf.mxu0
    %2397 = vdwg.mxu0
    %2398 = vmatprep.subr.bf16.mxu0 %v1920
    %2399 = vmatpush1.bf16.msra.mxu0 %v1919
    %2400 = vmatprep.subr.bf16.mxu0 %v1913
    %2401 = vmatpush1.bf16.msra.mxu0 %v1912
    %2402 = vmatprep.subr.bf16.mxu0 %v1906
    %2403 = vmatpush1.bf16.msra.mxu0 %v1905
    %2404 = vmatprep.subr.bf16.mxu0 %v1899
    %2405 = vmatpush1.bf16.msra.mxu0 %v1898
    %2406 = vmatprep.subr.bf16.mxu0 %v1892
    %2407 = vmatpush1.bf16.msra.mxu0 %v1891
    %2408 = vmatprep.subr.bf16.mxu0 %v1885
    %2409 = vmatpush1.bf16.msra.mxu0 %v1884
    %2410 = vmatprep.subr.bf16.mxu0 %v1878
    %2411 = vmatpush1.bf16.msra.mxu0 %v1877
    %2412 = vmatprep.subr.bf16.mxu0 %v1871
    %2413 = vmatpush1.bf16.msra.mxu0 %v1870
    %2414 = vmatprep.subr.bf16.mxu0 %v1976
    %2415 = vmatpush2.bf16.msra.mxu0 %v1975
    %2416 = vmatprep.subr.bf16.mxu0 %v1969
    %2417 = vmatpush2.bf16.msra.mxu0 %v1968
    %2418 = vmatprep.subr.bf16.mxu0 %v1962
    %2419 = vmatpush2.bf16.msra.mxu0 %v1961
    %2420 = vmatprep.subr.bf16.mxu0 %v1955
    %2421 = vmatpush2.bf16.msra.mxu0 %v1954
    %2422 = vmatprep.subr.bf16.mxu0 %v1948
    %2423 = vmatpush2.bf16.msra.mxu0 %v1947
    %2424 = vmatprep.subr.bf16.mxu0 %v1941
    %2425 = vmatpush2.bf16.msra.mxu0 %v1940
    %2426 = vmatprep.subr.bf16.mxu0 %v1934
    %2427 = vmatpush2.bf16.msra.mxu0 %v1933
    %2428 = vmatprep.subr.bf16.mxu0 %v1927
    %2429 = vmatpush2.bf16.msra.mxu0 %v1926
    %2430 = vmatprep.mubr.bf16.mxu0 %v868
    %2431 = vmatmul.mubr.bf16.gmra.mxu0 %v867
    %v2432 = vpop.f32.mrf.mxu0
    %v2433 = vadd.f32 %v1140, %v2432
    %v2434 = vpop.f32.mrf.mxu0
    %v2435 = vadd.f32 %v1144, %v2434
    %v2436 = vpop.f32.mrf.mxu0
    %v2437 = vpop.f32.mrf.mxu0
    %2438 = vdwg.mxu0
    %2439 = vmatprep.subr.bf16.mxu0 %v2032
    %2440 = vmatpush1.bf16.msra.mxu0 %v2031
    %2441 = vmatprep.subr.bf16.mxu0 %v2025
    %2442 = vmatpush1.bf16.msra.mxu0 %v2024
    %2443 = vmatprep.subr.bf16.mxu0 %v2018
    %2444 = vmatpush1.bf16.msra.mxu0 %v2017
    %2445 = vmatprep.subr.bf16.mxu0 %v2011
    %2446 = vmatpush1.bf16.msra.mxu0 %v2010
    %2447 = vmatprep.subr.bf16.mxu0 %v2004
    %2448 = vmatpush1.bf16.msra.mxu0 %v2003
    %2449 = vmatprep.subr.bf16.mxu0 %v1997
    %2450 = vmatpush1.bf16.msra.mxu0 %v1996
    %2451 = vmatprep.subr.bf16.mxu0 %v1990
    %2452 = vmatpush1.bf16.msra.mxu0 %v1989
    %2453 = vmatprep.subr.bf16.mxu0 %v1983
    %2454 = vmatpush1.bf16.msra.mxu0 %v1982
    %2455 = vmatprep.subr.bf16.mxu0 %v2088
    %2456 = vmatpush2.bf16.msra.mxu0 %v2087
    %2457 = vmatprep.subr.bf16.mxu0 %v2081
    %2458 = vmatpush2.bf16.msra.mxu0 %v2080
    %2459 = vmatprep.subr.bf16.mxu0 %v2074
    %2460 = vmatpush2.bf16.msra.mxu0 %v2073
    %2461 = vmatprep.subr.bf16.mxu0 %v2067
    %2462 = vmatpush2.bf16.msra.mxu0 %v2066
    %2463 = vmatprep.subr.bf16.mxu0 %v2060
    %2464 = vmatpush2.bf16.msra.mxu0 %v2059
    %2465 = vmatprep.subr.bf16.mxu0 %v2053
    %2466 = vmatpush2.bf16.msra.mxu0 %v2052
    %2467 = vmatprep.subr.bf16.mxu0 %v2046
    %2468 = vmatpush2.bf16.msra.mxu0 %v2045
    %2469 = vmatprep.subr.bf16.mxu0 %v2039
    %2470 = vmatpush2.bf16.msra.mxu0 %v2038
    %2471 = vmatprep.mubr.bf16.mxu0 %v870
    %2472 = vmatmul.mubr.bf16.gmra.mxu0 %v869
    %v2473 = vpop.f32.mrf.mxu0
    %v2474 = vadd.f32 %v2433, %v2473
    %v2475 = vpop.f32.mrf.mxu0
    %v2476 = vadd.f32 %v2435, %v2475
    %v2477 = vpop.f32.mrf.mxu0
    %v2478 = vpop.f32.mrf.mxu0
    %2479 = vdwg.mxu0
    %2480 = vmatprep.subr.bf16.mxu0 %v1922
    %2481 = vmatpush1.bf16.msra.mxu0 %v1921
    %2482 = vmatprep.subr.bf16.mxu0 %v1915
    %2483 = vmatpush1.bf16.msra.mxu0 %v1914
    %2484 = vmatprep.subr.bf16.mxu0 %v1908
    %2485 = vmatpush1.bf16.msra.mxu0 %v1907
    %2486 = vmatprep.subr.bf16.mxu0 %v1901
    %2487 = vmatpush1.bf16.msra.mxu0 %v1900
    %2488 = vmatprep.subr.bf16.mxu0 %v1894
    %2489 = vmatpush1.bf16.msra.mxu0 %v1893
    %2490 = vmatprep.subr.bf16.mxu0 %v1887
    %2491 = vmatpush1.bf16.msra.mxu0 %v1886
    %2492 = vmatprep.subr.bf16.mxu0 %v1880
    %2493 = vmatpush1.bf16.msra.mxu0 %v1879
    %2494 = vmatprep.subr.bf16.mxu0 %v1873
    %2495 = vmatpush1.bf16.msra.mxu0 %v1872
    %2496 = vmatprep.subr.bf16.mxu0 %v1978
    %2497 = vmatpush2.bf16.msra.mxu0 %v1977
    %2498 = vmatprep.subr.bf16.mxu0 %v1971
    %2499 = vmatpush2.bf16.msra.mxu0 %v1970
    %2500 = vmatprep.subr.bf16.mxu0 %v1964
    %2501 = vmatpush2.bf16.msra.mxu0 %v1963
    %2502 = vmatprep.subr.bf16.mxu0 %v1957
    %2503 = vmatpush2.bf16.msra.mxu0 %v1956
    %2504 = vmatprep.subr.bf16.mxu0 %v1950
    %2505 = vmatpush2.bf16.msra.mxu0 %v1949
    %2506 = vmatprep.subr.bf16.mxu0 %v1943
    %2507 = vmatpush2.bf16.msra.mxu0 %v1942
    %2508 = vmatprep.subr.bf16.mxu0 %v1936
    %2509 = vmatpush2.bf16.msra.mxu0 %v1935
    %2510 = vmatprep.subr.bf16.mxu0 %v1929
    %2511 = vmatpush2.bf16.msra.mxu0 %v1928
    %2512 = vmatprep.mubr.bf16.mxu0 %v868
    %2513 = vmatmul.mubr.bf16.gmra.mxu0 %v867
    %v2514 = vpop.f32.mrf.mxu0
    %v2515 = vadd.f32 %v1148, %v2514
    %v2516 = vpop.f32.mrf.mxu0
    %v2517 = vadd.f32 %v1152, %v2516
    %v2518 = vpop.f32.mrf.mxu0
    %v2519 = vpop.f32.mrf.mxu0
    %2520 = vdwg.mxu0
    %2521 = vmatprep.subr.bf16.mxu0 %v2034
    %2522 = vmatpush1.bf16.msra.mxu0 %v2033
    %2523 = vmatprep.subr.bf16.mxu0 %v2027
    %2524 = vmatpush1.bf16.msra.mxu0 %v2026
    %2525 = vmatprep.subr.bf16.mxu0 %v2020
    %2526 = vmatpush1.bf16.msra.mxu0 %v2019
    %2527 = vmatprep.subr.bf16.mxu0 %v2013
    %2528 = vmatpush1.bf16.msra.mxu0 %v2012
    %2529 = vmatprep.subr.bf16.mxu0 %v2006
    %2530 = vmatpush1.bf16.msra.mxu0 %v2005
    %2531 = vmatprep.subr.bf16.mxu0 %v1999
    %2532 = vmatpush1.bf16.msra.mxu0 %v1998
    %2533 = vmatprep.subr.bf16.mxu0 %v1992
    %2534 = vmatpush1.bf16.msra.mxu0 %v1991
    %2535 = vmatprep.subr.bf16.mxu0 %v1985
    %2536 = vmatpush1.bf16.msra.mxu0 %v1984
    %2537 = vmatprep.subr.bf16.mxu0 %v2090
    %2538 = vmatpush2.bf16.msra.mxu0 %v2089
    %2539 = vmatprep.subr.bf16.mxu0 %v2083
    %2540 = vmatpush2.bf16.msra.mxu0 %v2082
    %2541 = vmatprep.subr.bf16.mxu0 %v2076
    %2542 = vmatpush2.bf16.msra.mxu0 %v2075
    %2543 = vmatprep.subr.bf16.mxu0 %v2069
    %2544 = vmatpush2.bf16.msra.mxu0 %v2068
    %2545 = vmatprep.subr.bf16.mxu0 %v2062
    %2546 = vmatpush2.bf16.msra.mxu0 %v2061
    %2547 = vmatprep.subr.bf16.mxu0 %v2055
    %2548 = vmatpush2.bf16.msra.mxu0 %v2054
    %2549 = vmatprep.subr.bf16.mxu0 %v2048
    %2550 = vmatpush2.bf16.msra.mxu0 %v2047
    %2551 = vmatprep.subr.bf16.mxu0 %v2041
    %2552 = vmatpush2.bf16.msra.mxu0 %v2040
    %2553 = vmatprep.mubr.bf16.mxu0 %v870
    %2554 = vmatmul.mubr.bf16.gmra.mxu0 %v869
    %v2555 = vpop.f32.mrf.mxu0
    %v2556 = vadd.f32 %v2515, %v2555
    %v2557 = vpop.f32.mrf.mxu0
    %v2558 = vadd.f32 %v2517, %v2557
    %v2559 = vpop.f32.mrf.mxu0
    %v2560 = vpop.f32.mrf.mxu0
    %2561 = vdwg.mxu0
    %2562 = vmatprep.subr.bf16.mxu0 0
    %2563 = vmatpush1.bf16.msra.mxu0 %v1923
    %2564 = vmatprep.subr.bf16.mxu0 0
    %2565 = vmatpush1.bf16.msra.mxu0 %v1916
    %2566 = vmatprep.subr.bf16.mxu0 0
    %2567 = vmatpush1.bf16.msra.mxu0 %v1909
    %2568 = vmatprep.subr.bf16.mxu0 0
    %2569 = vmatpush1.bf16.msra.mxu0 %v1902
    %2570 = vmatprep.subr.bf16.mxu0 0
    %2571 = vmatpush1.bf16.msra.mxu0 %v1895
    %2572 = vmatprep.subr.bf16.mxu0 0
    %2573 = vmatpush1.bf16.msra.mxu0 %v1888
    %2574 = vmatprep.subr.bf16.mxu0 0
    %2575 = vmatpush1.bf16.msra.mxu0 %v1881
    %2576 = vmatprep.subr.bf16.mxu0 0
    %2577 = vmatpush1.bf16.msra.mxu0 %v1874
    %2578 = vmatprep.subr.bf16.mxu0 0
    %2579 = vmatpush2.bf16.msra.mxu0 %v1979
    %2580 = vmatprep.subr.bf16.mxu0 0
    %2581 = vmatpush2.bf16.msra.mxu0 %v1972
    %2582 = vmatprep.subr.bf16.mxu0 0
    %2583 = vmatpush2.bf16.msra.mxu0 %v1965
    %2584 = vmatprep.subr.bf16.mxu0 0
    %2585 = vmatpush2.bf16.msra.mxu0 %v1958
    %2586 = vmatprep.subr.bf16.mxu0 0
    %2587 = vmatpush2.bf16.msra.mxu0 %v1951
    %2588 = vmatprep.subr.bf16.mxu0 0
    %2589 = vmatpush2.bf16.msra.mxu0 %v1944
    %2590 = vmatprep.subr.bf16.mxu0 0
    %2591 = vmatpush2.bf16.msra.mxu0 %v1937
    %2592 = vmatprep.subr.bf16.mxu0 0
    %2593 = vmatpush2.bf16.msra.mxu0 %v1930
    %2594 = vmatprep.mubr.bf16.mxu0 %v868
    %2595 = vmatmul.mubr.bf16.gmra.mxu0 %v867
    %v2596 = vpop.f32.mrf.mxu0
    %v2597 = vadd.f32 %v1156, %v2596
    %v2598 = vpop.f32.mrf.mxu0
    %v2599 = vpop.f32.mrf.mxu0
    %v2600 = vpop.f32.mrf.mxu0
    %2601 = vdwg.mxu0
    %2602 = vmatprep.subr.bf16.mxu0 0
    %2603 = vmatpush1.bf16.msra.mxu0 %v2035
    %2604 = vmatprep.subr.bf16.mxu0 0
    %2605 = vmatpush1.bf16.msra.mxu0 %v2028
    %2606 = vmatprep.subr.bf16.mxu0 0
    %2607 = vmatpush1.bf16.msra.mxu0 %v2021
    %2608 = vmatprep.subr.bf16.mxu0 0
    %2609 = vmatpush1.bf16.msra.mxu0 %v2014
    %2610 = vmatprep.subr.bf16.mxu0 0
    %2611 = vmatpush1.bf16.msra.mxu0 %v2007
    %2612 = vmatprep.subr.bf16.mxu0 0
    %2613 = vmatpush1.bf16.msra.mxu0 %v2000
    %2614 = vmatprep.subr.bf16.mxu0 0
    %2615 = vmatpush1.bf16.msra.mxu0 %v1993
    %2616 = vmatprep.subr.bf16.mxu0 0
    %2617 = vmatpush1.bf16.msra.mxu0 %v1986
    %2618 = vmatprep.subr.bf16.mxu0 0
    %2619 = vmatpush2.bf16.msra.mxu0 %v2091
    %2620 = vmatprep.subr.bf16.mxu0 0
    %2621 = vmatpush2.bf16.msra.mxu0 %v2084
    %2622 = vmatprep.subr.bf16.mxu0 0
    %2623 = vmatpush2.bf16.msra.mxu0 %v2077
    %2624 = vmatprep.subr.bf16.mxu0 0
    %2625 = vmatpush2.bf16.msra.mxu0 %v2070
    %2626 = vmatprep.subr.bf16.mxu0 0
    %2627 = vmatpush2.bf16.msra.mxu0 %v2063
    %2628 = vmatprep.subr.bf16.mxu0 0
    %2629 = vmatpush2.bf16.msra.mxu0 %v2056
    %2630 = vmatprep.subr.bf16.mxu0 0
    %2631 = vmatpush2.bf16.msra.mxu0 %v2049
    %2632 = vmatprep.subr.bf16.mxu0 0
    %2633 = vmatpush2.bf16.msra.mxu0 %v2042
    %2634 = vmatprep.mubr.bf16.mxu0 %v870
    %2635 = vmatmul.mubr.bf16.gmra.mxu0 %v869
    %v2636 = vpop.f32.mrf.mxu0
    %v2637 = vadd.f32 %v2597, %v2636
    %v2638 = vpop.f32.mrf.mxu0
    %v2639 = vpop.f32.mrf.mxu0
    %v2640 = vpop.f32.mrf.mxu0
    %2641 = vdwg.mxu0
    %v2642 = vmul.f32 %v2392, 0.5
    %v2643 = vmul.f32 %v2394, 0.5
    %v2644 = vmul.f32 %v2474, 0.5
    %v2645 = vmul.f32 %v2476, 0.5
    %v2646 = vmul.f32 %v2556, 0.5
    %v2647 = vmul.f32 %v2558, 0.5
    %v2648 = vmul.f32 %v2637, 0.5
    %v2649 = vtanh.pop %v2642
    %v2650 = vtanh.pop %v2643
    %v2651 = vtanh.pop %v2644
    %v2652 = vtanh.pop %v2645
    %v2653 = vtanh.pop %v2646
    %v2654 = vtanh.pop %v2647
    %v2655 = vtanh.pop %v2648
    %v2656 = vmul.f32 %v2649, 0.5
    %v2657 = vmul.f32 %v2650, 0.5
    %v2658 = vmul.f32 %v2651, 0.5
    %v2659 = vmul.f32 %v2652, 0.5
    %v2660 = vmul.f32 %v2653, 0.5
    %v2661 = vmul.f32 %v2654, 0.5
    %v2662 = vmul.f32 %v2655, 0.5
    %v2663 = vadd.f32 %v2656, 0.5
    %v2664 = vadd.f32 %v2657, 0.5
    %v2665 = vadd.f32 %v2658, 0.5
    %v2666 = vadd.f32 %v2659, 0.5
    %v2667 = vadd.f32 %v2660, 0.5
    %v2668 = vadd.f32 %v2661, 0.5
    %v2669 = vadd.f32 %v2662, 0.5
    %2670 = vst [vmem:[#allocation16] sm:$0xff] %v2663
    %2671 = vst [vmem:[#allocation16 + $0x8] sm:$0xff] %v2664
    %2672 = vst [vmem:[#allocation16 + $0x10] sm:$0xff] %v2665
    %2673 = vst [vmem:[#allocation16 + $0x18] sm:$0xff] %v2666
    %2674 = vst [vmem:[#allocation16 + $0x20] sm:$0xff] %v2667
    %2675 = vst [vmem:[#allocation16 + $0x28] sm:$0xff] %v2668
    %2676 = vst [vmem:[#allocation16 + $0x30] sm:$0xff] %v2669
    // Predicated region
    $region70: #{decoder_forward.1} parent=1 // pred_check
      _
    $region71: #{decoder_forward.1} parent=1 // pred_check_branch
      %2678 = sbr.rel (0) target = $region73
    $region72: #{decoder_forward.1} parent=1 // pred_region
      %s2680 = ssub.s32 896, 896
      %2681 = vsyncadd [#allocation4], %s2680
      %s2683 = sshll.u32 [#allocation16], 4
      %s2684 = int_to_ptr.vmem [resolvable:$true] %s2683
      %2686 = dma.vmem_to_hbm [thread:$0]  %s2684, 896, %s9, [#allocation4]
    $region73: #{decoder_forward.1} parent=1 // pred_fallthru
      _
    // Predicated region
    $region74: #{decoder_forward.1} parent=1 // pred_check
      _
    $region75: #{decoder_forward.1} parent=1 // pred_check_branch
      %2688 = sbr.rel (0) target = $region77
    $region76: #{decoder_forward.1} parent=1 // pred_region
      %2689 = dma.done [#allocation4], 896
    $region77: #{decoder_forward.1} parent=1 // pred_fallthru
      _
    %2690 = vsyncpa [#allocation3], 1
    %2691 = vsyncpa [#allocation6], 1
    %2692 = vsyncpa [#allocation9], 1
    %2693 = vsyncpa [#allocation12], 1
    %2694 = vsyncpa [#allocation15], 1
    %2695 = vsyncpa [#allocation4], 1

</llo_original>
